<compile_context>
chip_gen: v7x
topology: tpu7x:2x2x1
jax: 0.10.0
libtpu: 0.0.40
codegen_flags: <defaults>
</compile_context>

<pallas_src>
import functools

import jax
import jax.numpy as jnp
from jax.experimental import pallas as pl
from jax.experimental.pallas import tpu as pltpu


def actor_kernel(num_layers, action_dim, state_ref, eps_ref, *refs):
    """One batch tile of the Actor forward (MLP + squashed-Gaussian head)."""
    param_refs = refs[:-1]
    out_ref = refs[-1]          # packed (TILE_B, 2*action_dim): [action | log_prob]

    x = state_ref[...].astype(jnp.float32)

    # --- MLP hot path: (TILE_B, D) @ (D, H) chains on the MXU ---
    for i in range(num_layers):
        w = param_refs[2 * i][...]
        b = param_refs[2 * i + 1][...]
        x = jnp.dot(x, w, preferred_element_type=jnp.float32) + b
        if i < num_layers - 1:
            # F.leaky_relu default negative_slope = 0.01
            x = jnp.where(x > 0, x, 0.01 * x)

    # --- chunk(2, dim=1): mu = x[:, :A], log_std = x[:, A:2A] ---
    mu = x[:, 0:action_dim]
    log_std = x[:, action_dim:2 * action_dim]

    # clamp_log_std
    log_std = jnp.clip(log_std, -20.0, 2.0)
    std = jnp.exp(log_std)

    # rsample: x_t = mu + std * eps
    eps = eps_ref[...].astype(jnp.float32)
    x_t = mu + std * eps
    y_t = jnp.tanh(x_t)

    # Normal(mu, std).log_prob(x_t) == -0.5*eps^2 - log_std - 0.5*log(2*pi)
    half_log_2pi = 0.5 * jnp.log(2.0 * jnp.pi)
    lp = -0.5 * eps * eps - log_std - half_log_2pi

    # tanh-squash correction (sum over action dim, keepdims) — kept exactly as
    # the PyTorch module writes it (1e-6 fudge included) for bit-level parity.
    lp = lp - jnp.sum(jnp.log(1.0 - y_t * y_t + 1e-6), axis=-1, keepdims=True)

    out_ref[...] = jnp.concatenate([y_t, lp], axis=-1).astype(out_ref.dtype)


def actor_forward(state, eps, params, action_dim, *, tile_b=128):
    """params: flat list [W0, b0, W1, b1, ...]; W_i (in, out), b_i (1, out)."""
    num_layers = len(params) // 2
    B, state_dim = state.shape
    out_width = 2 * action_dim

    # Keep tile_b a multiple of 8 (sublane constraint) and pad B up to a
    # multiple of tile_b so every grid step sees a full tile.
    tile_b = max(8, tile_b - tile_b % 8)
    b_pad = pl.cdiv(B, tile_b) * tile_b
    if b_pad != B:
        state = jnp.pad(state, ((0, b_pad - B), (0, 0)))
        eps = jnp.pad(eps, ((0, b_pad - B), (0, 0)))

    grid = (b_pad // tile_b,)

    # Batch-tiled, double-buffered specs for state / eps / packed output.
    state_spec = pl.BlockSpec((tile_b, state_dim), lambda i: (i, 0))
    eps_spec = pl.BlockSpec((tile_b, action_dim), lambda i: (i, 0))
    out_spec = pl.BlockSpec((tile_b, out_width), lambda i: (i, 0))

    # Weights / biases: full-array blocks with a constant index_map -> DMA'd
    # once and resident in VMEM across all grid steps.
    param_specs = [pl.BlockSpec(p.shape, lambda i: (0, 0)) for p in params]

    fn = pl.pallas_call(
        functools.partial(actor_kernel, num_layers, action_dim),
        out_shape=jax.ShapeDtypeStruct((b_pad, out_width), jnp.float32),
        grid=grid,
        in_specs=[state_spec, eps_spec] + param_specs,
        out_specs=out_spec,
        compiler_params=pltpu.CompilerParams(
            dimension_semantics=("parallel",)),
    )
    packed = fn(state, eps, *params)
    action = packed[:B, 0:action_dim]
    log_prob = packed[:B, action_dim:out_width]
    return action, log_prob


def init_actor_params(key, state_dim, action_dim, hidden_size, hidden_layers):
    """Deterministic synthetic init matching NeuralNetwork layer shapes."""
    dims = [state_dim] + [hidden_size] * (hidden_layers + 1) + [action_dim * 2]
    params = []
    for i in range(len(dims) - 1):
        key, kw, kb = jax.random.split(key, 3)
        fan_in = dims[i]
        scale = 1.0 / jnp.sqrt(jnp.float32(fan_in))
        w = jax.random.uniform(kw, (dims[i], dims[i + 1]), jnp.float32, -scale, scale)
        b = jax.random.uniform(kb, (1, dims[i + 1]), jnp.float32, -scale, scale)
        params += [w, b]
    return params


if __name__ == "__main__":
    # Shapes consistent with the module (state_dim=3, action_dim=1).  Batch is
    # large enough to exercise the batch grid (2 tiles of 128 rows).
    B = 256
    state_dim = 3
    action_dim = 1
    hidden_size = 32
    hidden_layers = 2

    key = jax.random.PRNGKey(0)
    k_state, k_eps, k_params = jax.random.split(key, 3)

    state = jax.random.normal(k_state, (B, state_dim), jnp.float32)
    eps = jax.random.normal(k_eps, (B, action_dim), jnp.float32)  # rsample noise
    params = init_actor_params(k_params, state_dim, action_dim, hidden_size, hidden_layers)

    action, log_prob = actor_forward(state, eps, params, action_dim, tile_b=128)
    jax.block_until_ready((action, log_prob))

    assert action.shape == (B, action_dim) and log_prob.shape == (B, action_dim), \
        "Incorrect shape for action or log_prob."
    assert bool(jnp.all(jnp.isfinite(action))) and bool(jnp.all(jnp.isfinite(log_prob)))
    print("KERNEL_OK")
</pallas_src>

<mosaic_0001>
module attributes {stable_mosaic.version = 11 : i64} {
  func.func @actor_kernel(%arg0: i32, %arg1: memref<128x3xf32, #tpu.memory_space<vmem>>, %arg2: memref<128x1xf32, #tpu.memory_space<vmem>>, %arg3: memref<3x32xf32, #tpu.memory_space<vmem>>, %arg4: memref<1x32xf32, #tpu.memory_space<vmem>>, %arg5: memref<32x32xf32, #tpu.memory_space<vmem>>, %arg6: memref<1x32xf32, #tpu.memory_space<vmem>>, %arg7: memref<32x32xf32, #tpu.memory_space<vmem>>, %arg8: memref<1x32xf32, #tpu.memory_space<vmem>>, %arg9: memref<32x2xf32, #tpu.memory_space<vmem>>, %arg10: memref<1x2xf32, #tpu.memory_space<vmem>>, %arg11: memref<128x2xf32, #tpu.memory_space<vmem>>) attributes {dimension_semantics = [#tpu.dimension_semantics<parallel>], iteration_bounds = array<i64: 2>, scalar_prefetch = 0 : i64, scratch_operands = 0 : i64, tpu.core_type = #tpu.core_type<tc>, window_params = [{transform_indices = @transform_0, window_bounds = array<i64: 128, 3>}, {transform_indices = @transform_1, window_bounds = array<i64: 128, 1>}, {pipeline_mode = #tpu.pipeline_mode<synchronous>, transform_indices = @transform_2, window_bounds = array<i64: 3, 32>}, {pipeline_mode = #tpu.pipeline_mode<synchronous>, transform_indices = @transform_3, window_bounds = array<i64: 1, 32>}, {pipeline_mode = #tpu.pipeline_mode<synchronous>, transform_indices = @transform_4, window_bounds = array<i64: 32, 32>}, {pipeline_mode = #tpu.pipeline_mode<synchronous>, transform_indices = @transform_5, window_bounds = array<i64: 1, 32>}, {pipeline_mode = #tpu.pipeline_mode<synchronous>, transform_indices = @transform_6, window_bounds = array<i64: 32, 32>}, {pipeline_mode = #tpu.pipeline_mode<synchronous>, transform_indices = @transform_7, window_bounds = array<i64: 1, 32>}, {pipeline_mode = #tpu.pipeline_mode<synchronous>, transform_indices = @transform_8, window_bounds = array<i64: 32, 2>}, {pipeline_mode = #tpu.pipeline_mode<synchronous>, transform_indices = @transform_9, window_bounds = array<i64: 1, 2>}, {transform_indices = @transform_10, window_bounds = array<i64: 128, 2>}]} {
    %c0 = arith.constant 0 : index
    %c0_0 = arith.constant 0 : index
    %0 = vector.load %arg1[%c0, %c0_0] : memref<128x3xf32, #tpu.memory_space<vmem>>, vector<128x3xf32>
    %c0_1 = arith.constant 0 : index
    %c0_2 = arith.constant 0 : index
    %1 = vector.load %arg3[%c0_1, %c0_2] : memref<3x32xf32, #tpu.memory_space<vmem>>, vector<3x32xf32>
    %c0_3 = arith.constant 0 : index
    %c0_4 = arith.constant 0 : index
    %2 = vector.load %arg4[%c0_3, %c0_4] : memref<1x32xf32, #tpu.memory_space<vmem>>, vector<1x32xf32>
    %cst = arith.constant dense<0.000000e+00> : vector<128x32xf32>
    %3 = tpu.matmul %0, %1, %cst {dimension_numbers = #tpu.dot_dimension_numbers<[1], [0], [0], [1], [0, 0, 1, 1], [], []>} : vector<128x3xf32>, vector<3x32xf32>, vector<128x32xf32> -> vector<128x32xf32>
    %4 = vector.broadcast %2 : vector<1x32xf32> to vector<128x32xf32>
    %5 = arith.addf %3, %4 : vector<128x32xf32>
    %cst_5 = arith.constant 0.000000e+00 : f32
    %6 = vector.broadcast %cst_5 : f32 to vector<128x32xf32>
    %7 = arith.cmpf ogt, %5, %6 : vector<128x32xf32>
    %cst_6 = arith.constant 0.00999999977 : f32
    %8 = vector.broadcast %cst_6 : f32 to vector<128x32xf32>
    %9 = arith.mulf %8, %5 : vector<128x32xf32>
    %10 = arith.select %7, %5, %9 : vector<128x32xi1>, vector<128x32xf32>
    %c0_7 = arith.constant 0 : index
    %c0_8 = arith.constant 0 : index
    %11 = vector.load %arg5[%c0_7, %c0_8] : memref<32x32xf32, #tpu.memory_space<vmem>>, vector<32x32xf32>
    %c0_9 = arith.constant 0 : index
    %c0_10 = arith.constant 0 : index
    %12 = vector.load %arg6[%c0_9, %c0_10] : memref<1x32xf32, #tpu.memory_space<vmem>>, vector<1x32xf32>
    %cst_11 = arith.constant dense<0.000000e+00> : vector<128x32xf32>
    %13 = tpu.matmul %10, %11, %cst_11 {dimension_numbers = #tpu.dot_dimension_numbers<[1], [0], [0], [1], [0, 0, 1, 1], [], []>} : vector<128x32xf32>, vector<32x32xf32>, vector<128x32xf32> -> vector<128x32xf32>
    %14 = vector.broadcast %12 : vector<1x32xf32> to vector<128x32xf32>
    %15 = arith.addf %13, %14 : vector<128x32xf32>
    %cst_12 = arith.constant 0.000000e+00 : f32
    %16 = vector.broadcast %cst_12 : f32 to vector<128x32xf32>
    %17 = arith.cmpf ogt, %15, %16 : vector<128x32xf32>
    %cst_13 = arith.constant 0.00999999977 : f32
    %18 = vector.broadcast %cst_13 : f32 to vector<128x32xf32>
    %19 = arith.mulf %18, %15 : vector<128x32xf32>
    %20 = arith.select %17, %15, %19 : vector<128x32xi1>, vector<128x32xf32>
    %c0_14 = arith.constant 0 : index
    %c0_15 = arith.constant 0 : index
    %21 = vector.load %arg7[%c0_14, %c0_15] : memref<32x32xf32, #tpu.memory_space<vmem>>, vector<32x32xf32>
    %c0_16 = arith.constant 0 : index
    %c0_17 = arith.constant 0 : index
    %22 = vector.load %arg8[%c0_16, %c0_17] : memref<1x32xf32, #tpu.memory_space<vmem>>, vector<1x32xf32>
    %cst_18 = arith.constant dense<0.000000e+00> : vector<128x32xf32>
    %23 = tpu.matmul %20, %21, %cst_18 {dimension_numbers = #tpu.dot_dimension_numbers<[1], [0], [0], [1], [0, 0, 1, 1], [], []>} : vector<128x32xf32>, vector<32x32xf32>, vector<128x32xf32> -> vector<128x32xf32>
    %24 = vector.broadcast %22 : vector<1x32xf32> to vector<128x32xf32>
    %25 = arith.addf %23, %24 : vector<128x32xf32>
    %cst_19 = arith.constant 0.000000e+00 : f32
    %26 = vector.broadcast %cst_19 : f32 to vector<128x32xf32>
    %27 = arith.cmpf ogt, %25, %26 : vector<128x32xf32>
    %cst_20 = arith.constant 0.00999999977 : f32
    %28 = vector.broadcast %cst_20 : f32 to vector<128x32xf32>
    %29 = arith.mulf %28, %25 : vector<128x32xf32>
    %30 = arith.select %27, %25, %29 : vector<128x32xi1>, vector<128x32xf32>
    %c0_21 = arith.constant 0 : index
    %c0_22 = arith.constant 0 : index
    %31 = vector.load %arg9[%c0_21, %c0_22] : memref<32x2xf32, #tpu.memory_space<vmem>>, vector<32x2xf32>
    %c0_23 = arith.constant 0 : index
    %c0_24 = arith.constant 0 : index
    %32 = vector.load %arg10[%c0_23, %c0_24] : memref<1x2xf32, #tpu.memory_space<vmem>>, vector<1x2xf32>
    %cst_25 = arith.constant dense<0.000000e+00> : vector<128x2xf32>
    %33 = tpu.matmul %30, %31, %cst_25 {dimension_numbers = #tpu.dot_dimension_numbers<[1], [0], [0], [1], [0, 0, 1, 1], [], []>} : vector<128x32xf32>, vector<32x2xf32>, vector<128x2xf32> -> vector<128x2xf32>
    %34 = vector.broadcast %32 : vector<1x2xf32> to vector<128x2xf32>
    %35 = arith.addf %33, %34 : vector<128x2xf32>
    %36 = vector.extract_strided_slice %35 {offsets = [0, 0], sizes = [128, 1], strides = [1, 1]} : vector<128x2xf32> to vector<128x1xf32>
    %37 = vector.extract_strided_slice %35 {offsets = [0, 1], sizes = [128, 1], strides = [1, 1]} : vector<128x2xf32> to vector<128x1xf32>
    %cst_26 = arith.constant -2.000000e+01 : f32
    %cst_27 = arith.constant 2.000000e+00 : f32
    %38 = vector.broadcast %cst_26 : f32 to vector<128x1xf32>
    %39 = arith.maximumf %38, %37 : vector<128x1xf32>
    %40 = vector.broadcast %cst_27 : f32 to vector<128x1xf32>
    %41 = arith.minimumf %40, %39 : vector<128x1xf32>
    %42 = math.exp %41 : vector<128x1xf32>
    %c0_28 = arith.constant 0 : index
    %c0_29 = arith.constant 0 : index
    %43 = vector.load %arg2[%c0_28, %c0_29] : memref<128x1xf32, #tpu.memory_space<vmem>>, vector<128x1xf32>
    %44 = arith.mulf %42, %43 : vector<128x1xf32>
    %45 = arith.addf %36, %44 : vector<128x1xf32>
    %46 = math.tanh %45 : vector<128x1xf32>
    %cst_30 = arith.constant 6.28318548 : f32
    %47 = math.log %cst_30 : f32
    %cst_31 = arith.constant 5.000000e-01 : f32
    %48 = arith.mulf %cst_31, %47 : f32
    %cst_32 = arith.constant -5.000000e-01 : f32
    %49 = vector.broadcast %cst_32 : f32 to vector<128x1xf32>
    %50 = arith.mulf %49, %43 : vector<128x1xf32>
    %51 = arith.mulf %50, %43 : vector<128x1xf32>
    %52 = arith.subf %51, %41 : vector<128x1xf32>
    %53 = vector.broadcast %48 : f32 to vector<128x1xf32>
    %54 = arith.subf %52, %53 : vector<128x1xf32>
    %55 = arith.mulf %46, %46 : vector<128x1xf32>
    %cst_33 = arith.constant 1.000000e+00 : f32
    %56 = vector.broadcast %cst_33 : f32 to vector<128x1xf32>
    %57 = arith.subf %56, %55 : vector<128x1xf32>
    %cst_34 = arith.constant 9.99999997E-7 : f32
    %58 = vector.broadcast %cst_34 : f32 to vector<128x1xf32>
    %59 = arith.addf %57, %58 : vector<128x1xf32>
    %60 = math.log %59 : vector<128x1xf32>
    %cst_35 = arith.constant dense<0.000000e+00> : vector<128xf32>
    %61 = vector.multi_reduction <add>, %60, %cst_35 [1] : vector<128x1xf32> to vector<128xf32>
    %62 = vector.shape_cast %61 : vector<128xf32> to vector<128x1xf32>
    %63 = arith.subf %54, %62 : vector<128x1xf32>
    %64 = tpu.concatenate %46, %63 in 1 : vector<128x1xf32>, vector<128x1xf32> -> vector<128x2xf32>
    %c0_36 = arith.constant 0 : index
    %c0_37 = arith.constant 0 : index
    %65 = vector.load %arg11[%c0_36, %c0_37] : memref<128x2xf32, #tpu.memory_space<vmem>>, vector<128x2xf32>
    tpu.vector_store %arg11[%c0_36, %c0_37], %64 {strides = array<i32>} : memref<128x2xf32, #tpu.memory_space<vmem>>, vector<128x2xf32>,
    return
  }
  func.func @transform_0(%arg0: i32) -> (i32, i32) {
    %c0_i32 = arith.constant 0 : i32
    %c0_i32_0 = arith.constant 0 : i32
    return %arg0, %c0_i32 : i32, i32
  }
  func.func @transform_1(%arg0: i32) -> (i32, i32) {
    %c0_i32 = arith.constant 0 : i32
    %c0_i32_0 = arith.constant 0 : i32
    return %arg0, %c0_i32 : i32, i32
  }
  func.func @transform_2(%arg0: i32) -> (i32, i32) {
    %c0_i32 = arith.constant 0 : i32
    %c0_i32_0 = arith.constant 0 : i32
    %c0_i32_1 = arith.constant 0 : i32
    return %c0_i32, %c0_i32_0 : i32, i32
  }
  func.func @transform_3(%arg0: i32) -> (i32, i32) {
    %c0_i32 = arith.constant 0 : i32
    %c0_i32_0 = arith.constant 0 : i32
    %c0_i32_1 = arith.constant 0 : i32
    return %c0_i32, %c0_i32_0 : i32, i32
  }
  func.func @transform_4(%arg0: i32) -> (i32, i32) {
    %c0_i32 = arith.constant 0 : i32
    %c0_i32_0 = arith.constant 0 : i32
    %c0_i32_1 = arith.constant 0 : i32
    return %c0_i32, %c0_i32_0 : i32, i32
  }
  func.func @transform_5(%arg0: i32) -> (i32, i32) {
    %c0_i32 = arith.constant 0 : i32
    %c0_i32_0 = arith.constant 0 : i32
    %c0_i32_1 = arith.constant 0 : i32
    return %c0_i32, %c0_i32_0 : i32, i32
  }
  func.func @transform_6(%arg0: i32) -> (i32, i32) {
    %c0_i32 = arith.constant 0 : i32
    %c0_i32_0 = arith.constant 0 : i32
    %c0_i32_1 = arith.constant 0 : i32
    return %c0_i32, %c0_i32_0 : i32, i32
  }
  func.func @transform_7(%arg0: i32) -> (i32, i32) {
    %c0_i32 = arith.constant 0 : i32
    %c0_i32_0 = arith.constant 0 : i32
    %c0_i32_1 = arith.constant 0 : i32
    return %c0_i32, %c0_i32_0 : i32, i32
  }
  func.func @transform_8(%arg0: i32) -> (i32, i32) {
    %c0_i32 = arith.constant 0 : i32
    %c0_i32_0 = arith.constant 0 : i32
    %c0_i32_1 = arith.constant 0 : i32
    return %c0_i32, %c0_i32_0 : i32, i32
  }
  func.func @transform_9(%arg0: i32) -> (i32, i32) {
    %c0_i32 = arith.constant 0 : i32
    %c0_i32_0 = arith.constant 0 : i32
    %c0_i32_1 = arith.constant 0 : i32
    return %c0_i32, %c0_i32_0 : i32, i32
  }
  func.func @transform_10(%arg0: i32) -> (i32, i32) {
    %c0_i32 = arith.constant 0 : i32
    %c0_i32_0 = arith.constant 0 : i32
    return %arg0, %c0_i32 : i32, i32
  }
}

</mosaic_0001>

<llo_original>
// kernel: tpu_custom_call.1
$region0: #{tpu_custom_call.1}
  #allocation0 [shape = 'u32[]', space=smem, size = 0x4, offset = 0x4, fixed_abs, tag = 'smem constant byte address 0x4 - core index']
  #allocation1 [shape = 'u32[144,128]{1,0:T(1,128)}', space=vmem, size = 0x12000, scoped, tag = 'internal scratch']
  %s0 = inlined_call_operand.vmem [shape: f32[256,3], index: 0, kind: input, shape index: {}]
  %s1 = inlined_call_operand.vmem [shape: f32[256,1], index: 1, kind: input, shape index: {}]
  %s2 = inlined_call_operand.vmem [shape: f32[3,32], index: 2, kind: input, shape index: {}]
  %s3 = inlined_call_operand.vmem [shape: f32[1,32], index: 3, kind: input, shape index: {}]
  %s4 = inlined_call_operand.vmem [shape: f32[32,32], index: 4, kind: input, shape index: {}]
  %s5 = inlined_call_operand.vmem [shape: f32[1,32], index: 5, kind: input, shape index: {}]
  %s6 = inlined_call_operand.vmem [shape: f32[32,32], index: 6, kind: input, shape index: {}]
  %s7 = inlined_call_operand.vmem [shape: f32[1,32], index: 7, kind: input, shape index: {}]
  %s8 = inlined_call_operand.vmem [shape: f32[32,2], index: 8, kind: input, shape index: {}]
  %s9 = inlined_call_operand.vmem [shape: f32[1,2], index: 9, kind: input, shape index: {}]
  %s10 = inlined_call_operand.vmem [shape: f32[256,2], index: 10, kind: output, shape index: {}]
  %s11 = sld [smem:[#allocation0]]
  $region73: #{tpu_custom_call.1} parent=0
    _
  %s13 = ssub.s32 1, %s11
  %s14 = scalar_select 0, %s13, %s11
  loop: start=0, step=1, limit=4
  $region2: #{tpu_custom_call.1} parent=0 // loop_pre_header
    _
  $region3: #{tpu_custom_call.1} parent=0 // loop_header
    %s16 = sphi 0, %s20
    %p17 = scmp.ge.s32.totalorder %s16, 4
    %s26 = sphi 0, %s28
    %s29 = sphi 0, %s26
    %s30 = sphi 0, %s29
    %s46 = sphi 0, %s30
    %s52 = sphi 0, %s54
    %s55 = sphi 0, %s52
    %s56 = sphi 0, %s55
    %s72 = sphi 0, %s56
    %s76 = sphi 0, %s76
    %s78 = sphi 0, %s76
    %s79 = sphi 0, %s78
    %s93 = sphi 0, %s79
    %s97 = sphi 0, %s97
    %s99 = sphi 0, %s97
    %s100 = sphi 0, %s99
    %s114 = sphi 0, %s100
    %s118 = sphi 0, %s118
    %s120 = sphi 0, %s118
    %s121 = sphi 0, %s120
    %s135 = sphi 0, %s121
    %s139 = sphi 0, %s139
    %s141 = sphi 0, %s139
    %s142 = sphi 0, %s141
    %s156 = sphi 0, %s142
    %s160 = sphi 0, %s160
    %s162 = sphi 0, %s160
    %s163 = sphi 0, %s162
    %s177 = sphi 0, %s163
    %s181 = sphi 0, %s181
    %s183 = sphi 0, %s181
    %s184 = sphi 0, %s183
    %s198 = sphi 0, %s184
    %s202 = sphi 0, %s202
    %s204 = sphi 0, %s202
    %s205 = sphi 0, %s204
    %s219 = sphi 0, %s205
    %s223 = sphi 0, %s223
    %s225 = sphi 0, %s223
    %s226 = sphi 0, %s225
    %s240 = sphi 0, %s226
    %s246 = sphi 0, %s248
    %s249 = sphi 0, %s246
    %s250 = sphi 0, %s249
    %s266 = sphi 0, %s250
  $region4: #{tpu_custom_call.1} parent=0 // loop_header_branch
    %19 = sbr.rel (%p17) target = $region8
  $region5: #{tpu_custom_call.1} parent=0 // loop_body
    %s21 = ssub.s32 %s16, 1
    %s22 = ssub.s32 %s16, 2
    %s23 = sadd.s32 %s16, 1
    %s24 = ssub.s32 %s16, %s23
    %p25 = scmp.eq.s32.totalorder %s24, 0
    %s27 = sadd.s32 %s26, 1
    %s28 = scalar_select %p25, %s26, %s27
    %p31 = pneg %p25
    %p32 = scmp.eq.s32.totalorder %s16, 1
    %p33 = por %p31, %p32
    %p34 = scmp.ne.s32.totalorder %s26, %s29
    %p35 = scmp.eq.s32.totalorder %s16, 0
    %p36 = por %p34, %p35
    %p37 = scmp.ne.s32.totalorder %s26, %s29
    %p38 = scmp.eq.s32.totalorder %s21, 1
    %p39 = por %p37, %p38
    %p40 = scmp.ne.s32.totalorder %s29, %s30
    %p41 = scmp.eq.s32.totalorder %s21, 0
    %p42 = por %p40, %p41
    %p43 = scmp.ne.s32.totalorder %s29, %s30
    %p44 = scmp.eq.s32.totalorder %s22, 1
    %p45 = por %p43, %p44
    %p47 = scmp.ne.s32.totalorder %s30, %s46
    %p48 = scmp.eq.s32.totalorder %s22, 0
    %p49 = por %p47, %p48
    %s50 = ssub.s32 %s16, %s23
    %p51 = scmp.eq.s32.totalorder %s50, 0
    %s53 = sadd.s32 %s52, 1
    %s54 = scalar_select %p51, %s52, %s53
    %p57 = pneg %p51
    %p58 = scmp.eq.s32.totalorder %s16, 1
    %p59 = por %p57, %p58
    %p60 = scmp.ne.s32.totalorder %s52, %s55
    %p61 = scmp.eq.s32.totalorder %s16, 0
    %p62 = por %p60, %p61
    %p63 = scmp.ne.s32.totalorder %s52, %s55
    %p64 = scmp.eq.s32.totalorder %s21, 1
    %p65 = por %p63, %p64
    %p66 = scmp.ne.s32.totalorder %s55, %s56
    %p67 = scmp.eq.s32.totalorder %s21, 0
    %p68 = por %p66, %p67
    %p69 = scmp.ne.s32.totalorder %s55, %s56
    %p70 = scmp.eq.s32.totalorder %s22, 1
    %p71 = por %p69, %p70
    %p73 = scmp.ne.s32.totalorder %s56, %s72
    %p74 = scmp.eq.s32.totalorder %s22, 0
    %p75 = por %p73, %p74
    %s77 = sadd.s32 %s76, 1
    %p80 = scmp.eq.s32.totalorder %s16, 1
    %p81 = scmp.ne.s32.totalorder %s76, %s78
    %p82 = scmp.eq.s32.totalorder %s16, 0
    %p83 = por %p81, %p82
    %p84 = scmp.ne.s32.totalorder %s76, %s78
    %p85 = scmp.eq.s32.totalorder %s21, 1
    %p86 = por %p84, %p85
    %p87 = scmp.ne.s32.totalorder %s78, %s79
    %p88 = scmp.eq.s32.totalorder %s21, 0
    %p89 = por %p87, %p88
    %p90 = scmp.ne.s32.totalorder %s78, %s79
    %p91 = scmp.eq.s32.totalorder %s22, 1
    %p92 = por %p90, %p91
    %p94 = scmp.ne.s32.totalorder %s79, %s93
    %p95 = scmp.eq.s32.totalorder %s22, 0
    %p96 = por %p94, %p95
    %s98 = sadd.s32 %s97, 1
    %p101 = scmp.eq.s32.totalorder %s16, 1
    %p102 = scmp.ne.s32.totalorder %s97, %s99
    %p103 = scmp.eq.s32.totalorder %s16, 0
    %p104 = por %p102, %p103
    %p105 = scmp.ne.s32.totalorder %s97, %s99
    %p106 = scmp.eq.s32.totalorder %s21, 1
    %p107 = por %p105, %p106
    %p108 = scmp.ne.s32.totalorder %s99, %s100
    %p109 = scmp.eq.s32.totalorder %s21, 0
    %p110 = por %p108, %p109
    %p111 = scmp.ne.s32.totalorder %s99, %s100
    %p112 = scmp.eq.s32.totalorder %s22, 1
    %p113 = por %p111, %p112
    %p115 = scmp.ne.s32.totalorder %s100, %s114
    %p116 = scmp.eq.s32.totalorder %s22, 0
    %p117 = por %p115, %p116
    %s119 = sadd.s32 %s118, 1
    %p122 = scmp.eq.s32.totalorder %s16, 1
    %p123 = scmp.ne.s32.totalorder %s118, %s120
    %p124 = scmp.eq.s32.totalorder %s16, 0
    %p125 = por %p123, %p124
    %p126 = scmp.ne.s32.totalorder %s118, %s120
    %p127 = scmp.eq.s32.totalorder %s21, 1
    %p128 = por %p126, %p127
    %p129 = scmp.ne.s32.totalorder %s120, %s121
    %p130 = scmp.eq.s32.totalorder %s21, 0
    %p131 = por %p129, %p130
    %p132 = scmp.ne.s32.totalorder %s120, %s121
    %p133 = scmp.eq.s32.totalorder %s22, 1
    %p134 = por %p132, %p133
    %p136 = scmp.ne.s32.totalorder %s121, %s135
    %p137 = scmp.eq.s32.totalorder %s22, 0
    %p138 = por %p136, %p137
    %s140 = sadd.s32 %s139, 1
    %p143 = scmp.eq.s32.totalorder %s16, 1
    %p144 = scmp.ne.s32.totalorder %s139, %s141
    %p145 = scmp.eq.s32.totalorder %s16, 0
    %p146 = por %p144, %p145
    %p147 = scmp.ne.s32.totalorder %s139, %s141
    %p148 = scmp.eq.s32.totalorder %s21, 1
    %p149 = por %p147, %p148
    %p150 = scmp.ne.s32.totalorder %s141, %s142
    %p151 = scmp.eq.s32.totalorder %s21, 0
    %p152 = por %p150, %p151
    %p153 = scmp.ne.s32.totalorder %s141, %s142
    %p154 = scmp.eq.s32.totalorder %s22, 1
    %p155 = por %p153, %p154
    %p157 = scmp.ne.s32.totalorder %s142, %s156
    %p158 = scmp.eq.s32.totalorder %s22, 0
    %p159 = por %p157, %p158
    %s161 = sadd.s32 %s160, 1
    %p164 = scmp.eq.s32.totalorder %s16, 1
    %p165 = scmp.ne.s32.totalorder %s160, %s162
    %p166 = scmp.eq.s32.totalorder %s16, 0
    %p167 = por %p165, %p166
    %p168 = scmp.ne.s32.totalorder %s160, %s162
    %p169 = scmp.eq.s32.totalorder %s21, 1
    %p170 = por %p168, %p169
    %p171 = scmp.ne.s32.totalorder %s162, %s163
    %p172 = scmp.eq.s32.totalorder %s21, 0
    %p173 = por %p171, %p172
    %p174 = scmp.ne.s32.totalorder %s162, %s163
    %p175 = scmp.eq.s32.totalorder %s22, 1
    %p176 = por %p174, %p175
    %p178 = scmp.ne.s32.totalorder %s163, %s177
    %p179 = scmp.eq.s32.totalorder %s22, 0
    %p180 = por %p178, %p179
    %s182 = sadd.s32 %s181, 1
    %p185 = scmp.eq.s32.totalorder %s16, 1
    %p186 = scmp.ne.s32.totalorder %s181, %s183
    %p187 = scmp.eq.s32.totalorder %s16, 0
    %p188 = por %p186, %p187
    %p189 = scmp.ne.s32.totalorder %s181, %s183
    %p190 = scmp.eq.s32.totalorder %s21, 1
    %p191 = por %p189, %p190
    %p192 = scmp.ne.s32.totalorder %s183, %s184
    %p193 = scmp.eq.s32.totalorder %s21, 0
    %p194 = por %p192, %p193
    %p195 = scmp.ne.s32.totalorder %s183, %s184
    %p196 = scmp.eq.s32.totalorder %s22, 1
    %p197 = por %p195, %p196
    %p199 = scmp.ne.s32.totalorder %s184, %s198
    %p200 = scmp.eq.s32.totalorder %s22, 0
    %p201 = por %p199, %p200
    %s203 = sadd.s32 %s202, 1
    %p206 = scmp.eq.s32.totalorder %s16, 1
    %p207 = scmp.ne.s32.totalorder %s202, %s204
    %p208 = scmp.eq.s32.totalorder %s16, 0
    %p209 = por %p207, %p208
    %p210 = scmp.ne.s32.totalorder %s202, %s204
    %p211 = scmp.eq.s32.totalorder %s21, 1
    %p212 = por %p210, %p211
    %p213 = scmp.ne.s32.totalorder %s204, %s205
    %p214 = scmp.eq.s32.totalorder %s21, 0
    %p215 = por %p213, %p214
    %p216 = scmp.ne.s32.totalorder %s204, %s205
    %p217 = scmp.eq.s32.totalorder %s22, 1
    %p218 = por %p216, %p217
    %p220 = scmp.ne.s32.totalorder %s205, %s219
    %p221 = scmp.eq.s32.totalorder %s22, 0
    %p222 = por %p220, %p221
    %s224 = sadd.s32 %s223, 1
    %p227 = scmp.eq.s32.totalorder %s16, 1
    %p228 = scmp.ne.s32.totalorder %s223, %s225
    %p229 = scmp.eq.s32.totalorder %s16, 0
    %p230 = por %p228, %p229
    %p231 = scmp.ne.s32.totalorder %s223, %s225
    %p232 = scmp.eq.s32.totalorder %s21, 1
    %p233 = por %p231, %p232
    %p234 = scmp.ne.s32.totalorder %s225, %s226
    %p235 = scmp.eq.s32.totalorder %s21, 0
    %p236 = por %p234, %p235
    %p237 = scmp.ne.s32.totalorder %s225, %s226
    %p238 = scmp.eq.s32.totalorder %s22, 1
    %p239 = por %p237, %p238
    %p241 = scmp.ne.s32.totalorder %s226, %s240
    %p242 = scmp.eq.s32.totalorder %s22, 0
    %p243 = por %p241, %p242
    %s244 = ssub.s32 %s16, %s23
    %p245 = scmp.eq.s32.totalorder %s244, 0
    %s247 = sadd.s32 %s246, 1
    %s248 = scalar_select %p245, %s246, %s247
    %p251 = pneg %p245
    %p252 = scmp.eq.s32.totalorder %s16, 1
    %p253 = por %p251, %p252
    %p254 = scmp.ne.s32.totalorder %s246, %s249
    %p255 = scmp.eq.s32.totalorder %s16, 0
    %p256 = por %p254, %p255
    %p257 = scmp.ne.s32.totalorder %s246, %s249
    %p258 = scmp.eq.s32.totalorder %s21, 1
    %p259 = por %p257, %p258
    %p260 = scmp.ne.s32.totalorder %s249, %s250
    %p261 = scmp.eq.s32.totalorder %s21, 0
    %p262 = por %p260, %p261
    %p263 = scmp.ne.s32.totalorder %s249, %s250
    %p264 = scmp.eq.s32.totalorder %s22, 1
    %p265 = por %p263, %p264
    %p267 = scmp.ne.s32.totalorder %s250, %s266
    %p268 = scmp.eq.s32.totalorder %s22, 0
    %p269 = por %p267, %p268
    %p270 = scmp.le.s32.totalorder 1, %s16
    %p271 = scmp.lt.s32.totalorder %s16, 3
    %p272 = pnand %p270, %p271
    %p273 = pneg %p272
    // Predicated region
    $region9: #{tpu_custom_call.1} parent=5 // pred_check
      _
    $region10: #{tpu_custom_call.1} parent=5 // pred_check_branch
      %275 = sbr.rel (%p272) target = $region12
    $region11: #{tpu_custom_call.1} parent=5 // pred_region
      %s276 = ssub.s32 %s16, 1
      // Predicated region
      $region13: #{tpu_custom_call.1} parent=11 // pred_check
        %p277 = pneg %p89
      $region14: #{tpu_custom_call.1} parent=11 // pred_check_branch
        %279 = sbr.rel (%p277) target = $region16
      $region15: #{tpu_custom_call.1} parent=11 // pred_region
        _
      $region16: #{tpu_custom_call.1} parent=11 // pred_fallthru
        _
      // Predicated region
      $region17: #{tpu_custom_call.1} parent=11 // pred_check
        %p280 = pneg %p110
      $region18: #{tpu_custom_call.1} parent=11 // pred_check_branch
        %282 = sbr.rel (%p280) target = $region20
      $region19: #{tpu_custom_call.1} parent=11 // pred_region
        _
      $region20: #{tpu_custom_call.1} parent=11 // pred_fallthru
        _
      // Predicated region
      $region21: #{tpu_custom_call.1} parent=11 // pred_check
        %p283 = pneg %p131
      $region22: #{tpu_custom_call.1} parent=11 // pred_check_branch
        %285 = sbr.rel (%p283) target = $region24
      $region23: #{tpu_custom_call.1} parent=11 // pred_region
        _
      $region24: #{tpu_custom_call.1} parent=11 // pred_fallthru
        _
      // Predicated region
      $region25: #{tpu_custom_call.1} parent=11 // pred_check
        %p286 = pneg %p152
      $region26: #{tpu_custom_call.1} parent=11 // pred_check_branch
        %288 = sbr.rel (%p286) target = $region28
      $region27: #{tpu_custom_call.1} parent=11 // pred_region
        _
      $region28: #{tpu_custom_call.1} parent=11 // pred_fallthru
        _
      // Predicated region
      $region29: #{tpu_custom_call.1} parent=11 // pred_check
        %p289 = pneg %p173
      $region30: #{tpu_custom_call.1} parent=11 // pred_check_branch
        %291 = sbr.rel (%p289) target = $region32
      $region31: #{tpu_custom_call.1} parent=11 // pred_region
        _
      $region32: #{tpu_custom_call.1} parent=11 // pred_fallthru
        _
      // Predicated region
      $region33: #{tpu_custom_call.1} parent=11 // pred_check
        %p292 = pneg %p194
      $region34: #{tpu_custom_call.1} parent=11 // pred_check_branch
        %294 = sbr.rel (%p292) target = $region36
      $region35: #{tpu_custom_call.1} parent=11 // pred_region
        _
      $region36: #{tpu_custom_call.1} parent=11 // pred_fallthru
        _
      // Predicated region
      $region37: #{tpu_custom_call.1} parent=11 // pred_check
        %p295 = pneg %p215
      $region38: #{tpu_custom_call.1} parent=11 // pred_check_branch
        %297 = sbr.rel (%p295) target = $region40
      $region39: #{tpu_custom_call.1} parent=11 // pred_region
        _
      $region40: #{tpu_custom_call.1} parent=11 // pred_fallthru
        _
      // Predicated region
      $region41: #{tpu_custom_call.1} parent=11 // pred_check
        %p298 = pneg %p236
      $region42: #{tpu_custom_call.1} parent=11 // pred_check_branch
        %300 = sbr.rel (%p298) target = $region44
      $region43: #{tpu_custom_call.1} parent=11 // pred_region
        _
      $region44: #{tpu_custom_call.1} parent=11 // pred_fallthru
        _
    $region12: #{tpu_custom_call.1} parent=5 // pred_fallthru
      _
    %p301 = scmp.lt.s32.totalorder %s16, 2
    // Predicated region
    $region45: #{tpu_custom_call.1} parent=5 // pred_check
      %p302 = pneg %p301
    $region46: #{tpu_custom_call.1} parent=5 // pred_check_branch
      %304 = sbr.rel (%p302) target = $region48
    $region47: #{tpu_custom_call.1} parent=5 // pred_region
      // Predicated region
      $region49: #{tpu_custom_call.1} parent=47 // pred_check
        %p305 = pneg %p36
      $region50: #{tpu_custom_call.1} parent=47 // pred_check_branch
        %307 = sbr.rel (%p305) target = $region52
      $region51: #{tpu_custom_call.1} parent=47 // pred_region
        %s308 = smul.u32 16, %s16
        %p309 = scmp.lt.s32.totalorder %s308, 31
        %s310 = scalar_select %p309, %s308, 31
        %s311 = smul.addr %s310, 8
        %s312 = scalar_lea.vmem %s0, %s311
        %s313 = smul.u32 16, %s16
      $region52: #{tpu_custom_call.1} parent=47 // pred_fallthru
        _
      // Predicated region
      $region53: #{tpu_custom_call.1} parent=47 // pred_check
        %p314 = pneg %p62
      $region54: #{tpu_custom_call.1} parent=47 // pred_check_branch
        %316 = sbr.rel (%p314) target = $region56
      $region55: #{tpu_custom_call.1} parent=47 // pred_region
        %s317 = smul.u32 16, %s16
        %p318 = scmp.lt.s32.totalorder %s317, 31
        %s319 = scalar_select %p318, %s317, 31
        %s320 = smul.addr %s319, 8
        %s321 = scalar_lea.vmem %s1, %s320
        %s322 = smul.u32 16, %s16
      $region56: #{tpu_custom_call.1} parent=47 // pred_fallthru
        _
    $region48: #{tpu_custom_call.1} parent=5 // pred_fallthru
      _
    %p323 = scmp.le.s32.totalorder 1, %s16
    %p324 = scmp.lt.s32.totalorder %s16, 3
    %p325 = pnand %p323, %p324
    %p326 = pneg %p325
    // Predicated region
    $region57: #{tpu_custom_call.1} parent=5 // pred_check
      _
    $region58: #{tpu_custom_call.1} parent=5 // pred_check_branch
      %328 = sbr.rel (%p325) target = $region60
    $region59: #{tpu_custom_call.1} parent=5 // pred_region
      %s329 = ssub.s32 %s16, 1
      %s330 = smul.u32 16, %s21
      %p331 = scmp.lt.s32.totalorder %s330, 31
      %s332 = scalar_select %p331, %s330, 31
      %s333 = smul.addr %s332, 8
      %s334 = scalar_lea.vmem %s0, %s333
      %p335 = pneg %p42
      %p336 = pneg %p39
      %s337 = smul.u32 16, %s21
      %p338 = scmp.lt.s32.totalorder %s337, 31
      %s339 = scalar_select %p338, %s337, 31
      %s340 = smul.addr %s339, 8
      %s341 = scalar_lea.vmem %s1, %s340
      %p342 = pneg %p68
      %p343 = pneg %p65
      %p344 = pneg %p89
      %p345 = pneg %p86
      %p346 = pneg %p110
      %p347 = pneg %p107
      %p348 = pneg %p131
      %p349 = pneg %p128
      %p350 = pneg %p152
      %p351 = pneg %p149
      %p352 = pneg %p173
      %p353 = pneg %p170
      %p354 = pneg %p194
      %p355 = pneg %p191
      %p356 = pneg %p215
      %p357 = pneg %p212
      %p358 = pneg %p236
      %p359 = pneg %p233
      %p360 = pneg %p262
      %p361 = pneg %p259
      %s362 = smul.u32 16, %s21
      %p363 = scmp.lt.s32.totalorder %s362, 31
      %s364 = scalar_select %p363, %s362, 31
      %s365 = smul.addr %s364, 8
      %s366 = scalar_lea.vmem %s10, %s365
      %s367 = smul.u32 16, %s21
      %p368 = scmp.lt.s32.totalorder %s367, 31
      %s369 = scalar_select %p368, %s367, 31
      %s370 = smul.addr %s369, 8
      %s371 = scalar_lea.vmem %s0, %s370
      %s372 = smul.u32 16, %s21
      %s373 = smul.u32 16, %s21
      %p374 = scmp.lt.s32.totalorder %s373, 31
      %s375 = scalar_select %p374, %s373, 31
      %s376 = smul.addr %s375, 8
      %s377 = scalar_lea.vmem %s1, %s376
      %s378 = smul.u32 16, %s21
      %s379 = smul.u32 16, %s21
      %p380 = scmp.lt.s32.totalorder %s379, 31
      %s381 = scalar_select %p380, %s379, 31
      %s382 = smul.addr %s381, 8
      %s383 = scalar_lea.vmem %s10, %s382
      %s384 = smul.u32 16, %s21
      %v385 = vld [vmem:[%s371] sm:$0xff]
      %v386 = vld [vmem:[%s371 + $0x8] sm:$0xff]
      %v387 = vld [vmem:[%s371 + $0x10] sm:$0xff]
      %v388 = vld [vmem:[%s371 + $0x18] sm:$0xff]
      %v389 = vld [vmem:[%s371 + $0x20] sm:$0xff]
      %v390 = vld [vmem:[%s371 + $0x28] sm:$0xff]
      %v391 = vld [vmem:[%s371 + $0x30] sm:$0xff]
      %v392 = vld [vmem:[%s371 + $0x38] sm:$0xff]
      %v393 = vld [vmem:[%s371 + $0x40] sm:$0xff]
      %v394 = vld [vmem:[%s371 + $0x48] sm:$0xff]
      %v395 = vld [vmem:[%s371 + $0x50] sm:$0xff]
      %v396 = vld [vmem:[%s371 + $0x58] sm:$0xff]
      %v397 = vld [vmem:[%s371 + $0x60] sm:$0xff]
      %v398 = vld [vmem:[%s371 + $0x68] sm:$0xff]
      %v399 = vld [vmem:[%s371 + $0x70] sm:$0xff]
      %v400 = vld [vmem:[%s371 + $0x78] sm:$0xff]
      %v401 = vld [vmem:[%s2] sm:$0x7]
      %v402 = vld [vmem:[%s3] sm:$0x1]
      %v404 = vlaneseq
      %v405 = vshrl.u32 %v404, 7
      %v406 = vsub.s32 0, %v405
      %v407 = vrot.slane %v402, %v406
      %vm409 = vcmask 23552
      %v411 = vsel %vm409, %v385, 0
      %v414 = vsel %vm409, %v386, 0
      %v417 = vsel %vm409, %v387, 0
      %v420 = vsel %vm409, %v388, 0
      %v423 = vsel %vm409, %v389, 0
      %v426 = vsel %vm409, %v390, 0
      %v429 = vsel %vm409, %v391, 0
      %v432 = vsel %vm409, %v392, 0
      %v435 = vsel %vm409, %v393, 0
      %v438 = vsel %vm409, %v394, 0
      %v441 = vsel %vm409, %v395, 0
      %v444 = vsel %vm409, %v396, 0
      %v447 = vsel %vm409, %v397, 0
      %v450 = vsel %vm409, %v398, 0
      %v453 = vsel %vm409, %v399, 0
      %v456 = vsel %vm409, %v400, 0
      %vm458 = vcmask 1042432
      %v460 = vsel %vm458, %v401, 0
      %462 = vmatprep.subr.mxu0 0.0
      %463 = vmatpush1.msra.mxu0 %v460
      %464 = vmatprep.subr.mxu0 0.0
      %465 = vmatpush1.msra.mxu0 0.0
      %466 = vmatprep.subr.mxu0 0.0
      %467 = vmatpush1.msra.mxu0 0.0
      %468 = vmatprep.subr.mxu0 0.0
      %469 = vmatpush1.msra.mxu0 0.0
      %470 = vmatprep.subr.mxu0 0.0
      %471 = vmatpush1.msra.mxu0 0.0
      %472 = vmatprep.subr.mxu0 0.0
      %473 = vmatpush1.msra.mxu0 0.0
      %474 = vmatprep.subr.mxu0 0.0
      %475 = vmatpush1.msra.mxu0 0.0
      %476 = vmatprep.subr.mxu0 0.0
      %477 = vmatpush1.msra.mxu0 0.0
      %478 = vmatprep.subr.mxu0 0.0
      %479 = vmatpush1.msra.mxu0 0.0
      %480 = vmatprep.subr.mxu0 0.0
      %481 = vmatpush1.msra.mxu0 0.0
      %482 = vmatprep.subr.mxu0 0.0
      %483 = vmatpush1.msra.mxu0 0.0
      %484 = vmatprep.subr.mxu0 0.0
      %485 = vmatpush1.msra.mxu0 0.0
      %486 = vmatprep.subr.mxu0 0.0
      %487 = vmatpush1.msra.mxu0 0.0
      %488 = vmatprep.subr.mxu0 0.0
      %489 = vmatpush1.msra.mxu0 0.0
      %490 = vmatprep.subr.mxu0 0.0
      %491 = vmatpush1.msra.mxu0 0.0
      %492 = vmatprep.subr.mxu0 0.0
      %493 = vmatpush1.msra.mxu0 0.0
      %494 = vmatprep.subr.mxu0 0.0
      %495 = vmatpush1.msra.mxu0 0.0
      %496 = vmatprep.subr.mxu0 0.0
      %497 = vmatpush1.msra.mxu0 0.0
      %498 = vmatprep.subr.mxu0 0.0
      %499 = vmatpush1.msra.mxu0 0.0
      %500 = vmatprep.subr.mxu0 0.0
      %501 = vmatpush1.msra.mxu0 0.0
      %502 = vmatprep.subr.mxu0 0.0
      %503 = vmatpush1.msra.mxu0 0.0
      %504 = vmatprep.subr.mxu0 0.0
      %505 = vmatpush1.msra.mxu0 0.0
      %506 = vmatprep.subr.mxu0 0.0
      %507 = vmatpush1.msra.mxu0 0.0
      %508 = vmatprep.subr.mxu0 0.0
      %509 = vmatpush1.msra.mxu0 0.0
      %510 = vmatprep.subr.mxu0 0.0
      %511 = vmatpush1.msra.mxu0 0.0
      %512 = vmatprep.subr.mxu0 0.0
      %513 = vmatpush1.msra.mxu0 0.0
      %514 = vmatprep.subr.mxu0 0.0
      %515 = vmatpush1.msra.mxu0 0.0
      %516 = vmatprep.subr.mxu0 0.0
      %517 = vmatpush1.msra.mxu0 0.0
      %518 = vmatprep.subr.mxu0 0.0
      %519 = vmatpush1.msra.mxu0 0.0
      %520 = vmatprep.subr.mxu0 0.0
      %521 = vmatpush1.msra.mxu0 0.0
      %522 = vmatprep.subr.mxu0 0.0
      %523 = vmatpush1.msra.mxu0 0.0
      %524 = vmatprep.subr.mxu0 0.0
      %525 = vmatpush1.msra.mxu0 0.0
      %526 = vmatprep.mubr.f32.mxu0 0.0
      %527 = vmatmul.mubr.f32.gmra.mrb[0].mxu0 %v411
      %v528 = vpop.f32.mrb[0].mxu0
      %v529 = vadd.f32 %v407, %v528
      %v530 = vpop.f32.mrb[0].mxu0
      %531 = vmatprep.mubr.f32.mxu0 0.0
      %532 = vmatmul.mubr.f32.gmra.mrb[0].mxu0 %v414
      %v533 = vpop.f32.mrb[0].mxu0
      %v534 = vadd.f32 %v407, %v533
      %v535 = vpop.f32.mrb[0].mxu0
      %536 = vmatprep.mubr.f32.mxu0 0.0
      %537 = vmatmul.mubr.f32.gmra.mrb[0].mxu0 %v417
      %v538 = vpop.f32.mrb[0].mxu0
      %v539 = vadd.f32 %v407, %v538
      %v540 = vpop.f32.mrb[0].mxu0
      %541 = vmatprep.mubr.f32.mxu0 0.0
      %542 = vmatmul.mubr.f32.gmra.mrb[0].mxu0 %v420
      %v543 = vpop.f32.mrb[0].mxu0
      %v544 = vadd.f32 %v407, %v543
      %v545 = vpop.f32.mrb[0].mxu0
      %546 = vmatprep.mubr.f32.mxu0 0.0
      %547 = vmatmul.mubr.f32.gmra.mrb[0].mxu0 %v423
      %v548 = vpop.f32.mrb[0].mxu0
      %v549 = vadd.f32 %v407, %v548
      %v550 = vpop.f32.mrb[0].mxu0
      %551 = vmatprep.mubr.f32.mxu0 0.0
      %552 = vmatmul.mubr.f32.gmra.mrb[0].mxu0 %v426
      %v553 = vpop.f32.mrb[0].mxu0
      %v554 = vadd.f32 %v407, %v553
      %v555 = vpop.f32.mrb[0].mxu0
      %556 = vmatprep.mubr.f32.mxu0 0.0
      %557 = vmatmul.mubr.f32.gmra.mrb[0].mxu0 %v429
      %v558 = vpop.f32.mrb[0].mxu0
      %v559 = vadd.f32 %v407, %v558
      %v560 = vpop.f32.mrb[0].mxu0
      %561 = vmatprep.mubr.f32.mxu0 0.0
      %562 = vmatmul.mubr.f32.gmra.mrb[0].mxu0 %v432
      %v563 = vpop.f32.mrb[0].mxu0
      %v564 = vadd.f32 %v407, %v563
      %v565 = vpop.f32.mrb[0].mxu0
      %566 = vmatprep.mubr.f32.mxu0 0.0
      %567 = vmatmul.mubr.f32.gmra.mrb[0].mxu0 %v435
      %v568 = vpop.f32.mrb[0].mxu0
      %v569 = vadd.f32 %v407, %v568
      %v570 = vpop.f32.mrb[0].mxu0
      %571 = vmatprep.mubr.f32.mxu0 0.0
      %572 = vmatmul.mubr.f32.gmra.mrb[0].mxu0 %v438
      %v573 = vpop.f32.mrb[0].mxu0
      %v574 = vadd.f32 %v407, %v573
      %v575 = vpop.f32.mrb[0].mxu0
      %576 = vmatprep.mubr.f32.mxu0 0.0
      %577 = vmatmul.mubr.f32.gmra.mrb[0].mxu0 %v441
      %v578 = vpop.f32.mrb[0].mxu0
      %v579 = vadd.f32 %v407, %v578
      %v580 = vpop.f32.mrb[0].mxu0
      %581 = vmatprep.mubr.f32.mxu0 0.0
      %582 = vmatmul.mubr.f32.gmra.mrb[0].mxu0 %v444
      %v583 = vpop.f32.mrb[0].mxu0
      %v584 = vadd.f32 %v407, %v583
      %v585 = vpop.f32.mrb[0].mxu0
      %586 = vmatprep.mubr.f32.mxu0 0.0
      %587 = vmatmul.mubr.f32.gmra.mrb[0].mxu0 %v447
      %v588 = vpop.f32.mrb[0].mxu0
      %v589 = vadd.f32 %v407, %v588
      %v590 = vpop.f32.mrb[0].mxu0
      %591 = vmatprep.mubr.f32.mxu0 0.0
      %592 = vmatmul.mubr.f32.gmra.mrb[0].mxu0 %v450
      %v593 = vpop.f32.mrb[0].mxu0
      %v594 = vadd.f32 %v407, %v593
      %v595 = vpop.f32.mrb[0].mxu0
      %596 = vmatprep.mubr.f32.mxu0 0.0
      %597 = vmatmul.mubr.f32.gmra.mrb[0].mxu0 %v453
      %v598 = vpop.f32.mrb[0].mxu0
      %v599 = vadd.f32 %v407, %v598
      %v600 = vpop.f32.mrb[0].mxu0
      %601 = vmatprep.mubr.f32.mxu0 0.0
      %602 = vmatmul.mubr.f32.gmra.mrb[0].mxu0 %v456
      %v603 = vpop.f32.mrb[0].mxu0
      %v604 = vadd.f32 %v407, %v603
      %v605 = vpop.f32.mrb[0].mxu0
      %606 = vdwg.mxu0
      %vm607 = vcmp.gt.f32.partialorder %v529, 0.0
      %vm608 = vcmp.gt.f32.partialorder %v534, 0.0
      %vm609 = vcmp.gt.f32.partialorder %v539, 0.0
      %vm610 = vcmp.gt.f32.partialorder %v544, 0.0
      %vm611 = vcmp.gt.f32.partialorder %v549, 0.0
      %vm612 = vcmp.gt.f32.partialorder %v554, 0.0
      %vm613 = vcmp.gt.f32.partialorder %v559, 0.0
      %vm614 = vcmp.gt.f32.partialorder %v564, 0.0
      %vm615 = vcmp.gt.f32.partialorder %v569, 0.0
      %vm616 = vcmp.gt.f32.partialorder %v574, 0.0
      %vm617 = vcmp.gt.f32.partialorder %v579, 0.0
      %vm618 = vcmp.gt.f32.partialorder %v584, 0.0
      %vm619 = vcmp.gt.f32.partialorder %v589, 0.0
      %vm620 = vcmp.gt.f32.partialorder %v594, 0.0
      %vm621 = vcmp.gt.f32.partialorder %v599, 0.0
      %vm622 = vcmp.gt.f32.partialorder %v604, 0.0
      %v623 = vmul.f32 %v529, 0.01
      %v624 = vmul.f32 %v534, 0.01
      %v625 = vmul.f32 %v539, 0.01
      %v626 = vmul.f32 %v544, 0.01
      %v627 = vmul.f32 %v549, 0.01
      %v628 = vmul.f32 %v554, 0.01
      %v629 = vmul.f32 %v559, 0.01
      %v630 = vmul.f32 %v564, 0.01
      %v631 = vmul.f32 %v569, 0.01
      %v632 = vmul.f32 %v574, 0.01
      %v633 = vmul.f32 %v579, 0.01
      %v634 = vmul.f32 %v584, 0.01
      %v635 = vmul.f32 %v589, 0.01
      %v636 = vmul.f32 %v594, 0.01
      %v637 = vmul.f32 %v599, 0.01
      %v638 = vmul.f32 %v604, 0.01
      %v639 = vsel %vm607, %v529, %v623
      %v640 = vsel %vm608, %v534, %v624
      %v641 = vsel %vm609, %v539, %v625
      %v642 = vsel %vm610, %v544, %v626
      %v643 = vsel %vm611, %v549, %v627
      %v644 = vsel %vm612, %v554, %v628
      %v645 = vsel %vm613, %v559, %v629
      %v646 = vsel %vm614, %v564, %v630
      %v647 = vsel %vm615, %v569, %v631
      %v648 = vsel %vm616, %v574, %v632
      %v649 = vsel %vm617, %v579, %v633
      %v650 = vsel %vm618, %v584, %v634
      %v651 = vsel %vm619, %v589, %v635
      %v652 = vsel %vm620, %v594, %v636
      %v653 = vsel %vm621, %v599, %v637
      %v654 = vsel %vm622, %v604, %v638
      %v655 = vld [vmem:[%s4] sm:$0xff]
      %v656 = vld [vmem:[%s4 + $0x8] sm:$0xff]
      %v657 = vld [vmem:[%s4 + $0x10] sm:$0xff]
      %v658 = vld [vmem:[%s4 + $0x18] sm:$0xff]
      %v659 = vld [vmem:[%s5] sm:$0x1]
      %v661 = vlaneseq
      %v662 = vshrl.u32 %v661, 7
      %v663 = vsub.s32 0, %v662
      %v664 = vrot.slane %v659, %v663
      %vm666 = vcmask 261120
      %v668 = vsel %vm666, %v639, 0
      %v671 = vsel %vm666, %v640, 0
      %v674 = vsel %vm666, %v641, 0
      %v677 = vsel %vm666, %v642, 0
      %v680 = vsel %vm666, %v643, 0
      %v683 = vsel %vm666, %v644, 0
      %v686 = vsel %vm666, %v645, 0
      %v689 = vsel %vm666, %v646, 0
      %v692 = vsel %vm666, %v647, 0
      %v695 = vsel %vm666, %v648, 0
      %v698 = vsel %vm666, %v649, 0
      %v701 = vsel %vm666, %v650, 0
      %v704 = vsel %vm666, %v651, 0
      %v707 = vsel %vm666, %v652, 0
      %v710 = vsel %vm666, %v653, 0
      %v713 = vsel %vm666, %v654, 0
      %715 = vmatprep.subr.mxu0 0.0
      %716 = vmatpush1.msra.mxu0 %v655
      %717 = vmatprep.subr.mxu0 0.0
      %718 = vmatpush1.msra.mxu0 %v656
      %719 = vmatprep.subr.mxu0 0.0
      %720 = vmatpush1.msra.mxu0 %v657
      %721 = vmatprep.subr.mxu0 0.0
      %722 = vmatpush1.msra.mxu0 %v658
      %723 = vmatprep.subr.mxu0 0.0
      %724 = vmatpush1.msra.mxu0 0.0
      %725 = vmatprep.subr.mxu0 0.0
      %726 = vmatpush1.msra.mxu0 0.0
      %727 = vmatprep.subr.mxu0 0.0
      %728 = vmatpush1.msra.mxu0 0.0
      %729 = vmatprep.subr.mxu0 0.0
      %730 = vmatpush1.msra.mxu0 0.0
      %731 = vmatprep.subr.mxu0 0.0
      %732 = vmatpush1.msra.mxu0 0.0
      %733 = vmatprep.subr.mxu0 0.0
      %734 = vmatpush1.msra.mxu0 0.0
      %735 = vmatprep.subr.mxu0 0.0
      %736 = vmatpush1.msra.mxu0 0.0
      %737 = vmatprep.subr.mxu0 0.0
      %738 = vmatpush1.msra.mxu0 0.0
      %739 = vmatprep.subr.mxu0 0.0
      %740 = vmatpush1.msra.mxu0 0.0
      %741 = vmatprep.subr.mxu0 0.0
      %742 = vmatpush1.msra.mxu0 0.0
      %743 = vmatprep.subr.mxu0 0.0
      %744 = vmatpush1.msra.mxu0 0.0
      %745 = vmatprep.subr.mxu0 0.0
      %746 = vmatpush1.msra.mxu0 0.0
      %747 = vmatprep.subr.mxu0 0.0
      %748 = vmatpush1.msra.mxu0 0.0
      %749 = vmatprep.subr.mxu0 0.0
      %750 = vmatpush1.msra.mxu0 0.0
      %751 = vmatprep.subr.mxu0 0.0
      %752 = vmatpush1.msra.mxu0 0.0
      %753 = vmatprep.subr.mxu0 0.0
      %754 = vmatpush1.msra.mxu0 0.0
      %755 = vmatprep.subr.mxu0 0.0
      %756 = vmatpush1.msra.mxu0 0.0
      %757 = vmatprep.subr.mxu0 0.0
      %758 = vmatpush1.msra.mxu0 0.0
      %759 = vmatprep.subr.mxu0 0.0
      %760 = vmatpush1.msra.mxu0 0.0
      %761 = vmatprep.subr.mxu0 0.0
      %762 = vmatpush1.msra.mxu0 0.0
      %763 = vmatprep.subr.mxu0 0.0
      %764 = vmatpush1.msra.mxu0 0.0
      %765 = vmatprep.subr.mxu0 0.0
      %766 = vmatpush1.msra.mxu0 0.0
      %767 = vmatprep.subr.mxu0 0.0
      %768 = vmatpush1.msra.mxu0 0.0
      %769 = vmatprep.subr.mxu0 0.0
      %770 = vmatpush1.msra.mxu0 0.0
      %771 = vmatprep.subr.mxu0 0.0
      %772 = vmatpush1.msra.mxu0 0.0
      %773 = vmatprep.subr.mxu0 0.0
      %774 = vmatpush1.msra.mxu0 0.0
      %775 = vmatprep.subr.mxu0 0.0
      %776 = vmatpush1.msra.mxu0 0.0
      %777 = vmatprep.subr.mxu0 0.0
      %778 = vmatpush1.msra.mxu0 0.0
      %779 = vmatprep.mubr.f32.mxu0 0.0
      %780 = vmatmul.mubr.f32.gmra.mrb[0].mxu0 %v668
      %v781 = vpop.f32.mrb[0].mxu0
      %v782 = vadd.f32 %v664, %v781
      %v783 = vpop.f32.mrb[0].mxu0
      %784 = vmatprep.mubr.f32.mxu0 0.0
      %785 = vmatmul.mubr.f32.gmra.mrb[0].mxu0 %v671
      %v786 = vpop.f32.mrb[0].mxu0
      %v787 = vadd.f32 %v664, %v786
      %v788 = vpop.f32.mrb[0].mxu0
      %789 = vmatprep.mubr.f32.mxu0 0.0
      %790 = vmatmul.mubr.f32.gmra.mrb[0].mxu0 %v674
      %v791 = vpop.f32.mrb[0].mxu0
      %v792 = vadd.f32 %v664, %v791
      %v793 = vpop.f32.mrb[0].mxu0
      %794 = vmatprep.mubr.f32.mxu0 0.0
      %795 = vmatmul.mubr.f32.gmra.mrb[0].mxu0 %v677
      %v796 = vpop.f32.mrb[0].mxu0
      %v797 = vadd.f32 %v664, %v796
      %v798 = vpop.f32.mrb[0].mxu0
      %799 = vmatprep.mubr.f32.mxu0 0.0
      %800 = vmatmul.mubr.f32.gmra.mrb[0].mxu0 %v680
      %v801 = vpop.f32.mrb[0].mxu0
      %v802 = vadd.f32 %v664, %v801
      %v803 = vpop.f32.mrb[0].mxu0
      %804 = vmatprep.mubr.f32.mxu0 0.0
      %805 = vmatmul.mubr.f32.gmra.mrb[0].mxu0 %v683
      %v806 = vpop.f32.mrb[0].mxu0
      %v807 = vadd.f32 %v664, %v806
      %v808 = vpop.f32.mrb[0].mxu0
      %809 = vmatprep.mubr.f32.mxu0 0.0
      %810 = vmatmul.mubr.f32.gmra.mrb[0].mxu0 %v686
      %v811 = vpop.f32.mrb[0].mxu0
      %v812 = vadd.f32 %v664, %v811
      %v813 = vpop.f32.mrb[0].mxu0
      %814 = vmatprep.mubr.f32.mxu0 0.0
      %815 = vmatmul.mubr.f32.gmra.mrb[0].mxu0 %v689
      %v816 = vpop.f32.mrb[0].mxu0
      %v817 = vadd.f32 %v664, %v816
      %v818 = vpop.f32.mrb[0].mxu0
      %819 = vmatprep.mubr.f32.mxu0 0.0
      %820 = vmatmul.mubr.f32.gmra.mrb[0].mxu0 %v692
      %v821 = vpop.f32.mrb[0].mxu0
      %v822 = vadd.f32 %v664, %v821
      %v823 = vpop.f32.mrb[0].mxu0
      %824 = vmatprep.mubr.f32.mxu0 0.0
      %825 = vmatmul.mubr.f32.gmra.mrb[0].mxu0 %v695
      %v826 = vpop.f32.mrb[0].mxu0
      %v827 = vadd.f32 %v664, %v826
      %v828 = vpop.f32.mrb[0].mxu0
      %829 = vmatprep.mubr.f32.mxu0 0.0
      %830 = vmatmul.mubr.f32.gmra.mrb[0].mxu0 %v698
      %v831 = vpop.f32.mrb[0].mxu0
      %v832 = vadd.f32 %v664, %v831
      %v833 = vpop.f32.mrb[0].mxu0
      %834 = vmatprep.mubr.f32.mxu0 0.0
      %835 = vmatmul.mubr.f32.gmra.mrb[0].mxu0 %v701
      %v836 = vpop.f32.mrb[0].mxu0
      %v837 = vadd.f32 %v664, %v836
      %v838 = vpop.f32.mrb[0].mxu0
      %839 = vmatprep.mubr.f32.mxu0 0.0
      %840 = vmatmul.mubr.f32.gmra.mrb[0].mxu0 %v704
      %v841 = vpop.f32.mrb[0].mxu0
      %v842 = vadd.f32 %v664, %v841
      %v843 = vpop.f32.mrb[0].mxu0
      %844 = vmatprep.mubr.f32.mxu0 0.0
      %845 = vmatmul.mubr.f32.gmra.mrb[0].mxu0 %v707
      %v846 = vpop.f32.mrb[0].mxu0
      %v847 = vadd.f32 %v664, %v846
      %v848 = vpop.f32.mrb[0].mxu0
      %849 = vmatprep.mubr.f32.mxu0 0.0
      %850 = vmatmul.mubr.f32.gmra.mrb[0].mxu0 %v710
      %v851 = vpop.f32.mrb[0].mxu0
      %v852 = vadd.f32 %v664, %v851
      %v853 = vpop.f32.mrb[0].mxu0
      %854 = vmatprep.mubr.f32.mxu0 0.0
      %855 = vmatmul.mubr.f32.gmra.mrb[0].mxu0 %v713
      %v856 = vpop.f32.mrb[0].mxu0
      %v857 = vadd.f32 %v664, %v856
      %v858 = vpop.f32.mrb[0].mxu0
      %859 = vdwg.mxu0
      %vm860 = vcmp.gt.f32.partialorder %v782, 0.0
      %vm861 = vcmp.gt.f32.partialorder %v787, 0.0
      %vm862 = vcmp.gt.f32.partialorder %v792, 0.0
      %vm863 = vcmp.gt.f32.partialorder %v797, 0.0
      %vm864 = vcmp.gt.f32.partialorder %v802, 0.0
      %vm865 = vcmp.gt.f32.partialorder %v807, 0.0
      %vm866 = vcmp.gt.f32.partialorder %v812, 0.0
      %vm867 = vcmp.gt.f32.partialorder %v817, 0.0
      %vm868 = vcmp.gt.f32.partialorder %v822, 0.0
      %vm869 = vcmp.gt.f32.partialorder %v827, 0.0
      %vm870 = vcmp.gt.f32.partialorder %v832, 0.0
      %vm871 = vcmp.gt.f32.partialorder %v837, 0.0
      %vm872 = vcmp.gt.f32.partialorder %v842, 0.0
      %vm873 = vcmp.gt.f32.partialorder %v847, 0.0
      %vm874 = vcmp.gt.f32.partialorder %v852, 0.0
      %vm875 = vcmp.gt.f32.partialorder %v857, 0.0
      %v876 = vmul.f32 %v782, 0.01
      %v877 = vmul.f32 %v787, 0.01
      %v878 = vmul.f32 %v792, 0.01
      %v879 = vmul.f32 %v797, 0.01
      %v880 = vmul.f32 %v802, 0.01
      %v881 = vmul.f32 %v807, 0.01
      %v882 = vmul.f32 %v812, 0.01
      %v883 = vmul.f32 %v817, 0.01
      %v884 = vmul.f32 %v822, 0.01
      %v885 = vmul.f32 %v827, 0.01
      %v886 = vmul.f32 %v832, 0.01
      %v887 = vmul.f32 %v837, 0.01
      %v888 = vmul.f32 %v842, 0.01
      %v889 = vmul.f32 %v847, 0.01
      %v890 = vmul.f32 %v852, 0.01
      %v891 = vmul.f32 %v857, 0.01
      %v892 = vsel %vm860, %v782, %v876
      %v893 = vsel %vm861, %v787, %v877
      %v894 = vsel %vm862, %v792, %v878
      %v895 = vsel %vm863, %v797, %v879
      %v896 = vsel %vm864, %v802, %v880
      %v897 = vsel %vm865, %v807, %v881
      %v898 = vsel %vm866, %v812, %v882
      %v899 = vsel %vm867, %v817, %v883
      %v900 = vsel %vm868, %v822, %v884
      %v901 = vsel %vm869, %v827, %v885
      %v902 = vsel %vm870, %v832, %v886
      %v903 = vsel %vm871, %v837, %v887
      %v904 = vsel %vm872, %v842, %v888
      %v905 = vsel %vm873, %v847, %v889
      %v906 = vsel %vm874, %v852, %v890
      %v907 = vsel %vm875, %v857, %v891
      %v908 = vld [vmem:[%s6] sm:$0xff]
      %v909 = vld [vmem:[%s6 + $0x8] sm:$0xff]
      %v910 = vld [vmem:[%s6 + $0x10] sm:$0xff]
      %v911 = vld [vmem:[%s6 + $0x18] sm:$0xff]
      %v912 = vld [vmem:[%s7] sm:$0x1]
      %v914 = vlaneseq
      %v915 = vshrl.u32 %v914, 7
      %v916 = vsub.s32 0, %v915
      %v917 = vrot.slane %v912, %v916
      %v920 = vsel %vm666, %v892, 0
      %v923 = vsel %vm666, %v893, 0
      %v926 = vsel %vm666, %v894, 0
      %v929 = vsel %vm666, %v895, 0
      %v932 = vsel %vm666, %v896, 0
      %v935 = vsel %vm666, %v897, 0
      %v938 = vsel %vm666, %v898, 0
      %v941 = vsel %vm666, %v899, 0
      %v944 = vsel %vm666, %v900, 0
      %v947 = vsel %vm666, %v901, 0
      %v950 = vsel %vm666, %v902, 0
      %v953 = vsel %vm666, %v903, 0
      %v956 = vsel %vm666, %v904, 0
      %v959 = vsel %vm666, %v905, 0
      %v962 = vsel %vm666, %v906, 0
      %v965 = vsel %vm666, %v907, 0
      %967 = vmatprep.subr.mxu0 0.0
      %968 = vmatpush1.msra.mxu0 %v908
      %969 = vmatprep.subr.mxu0 0.0
      %970 = vmatpush1.msra.mxu0 %v909
      %971 = vmatprep.subr.mxu0 0.0
      %972 = vmatpush1.msra.mxu0 %v910
      %973 = vmatprep.subr.mxu0 0.0
      %974 = vmatpush1.msra.mxu0 %v911
      %975 = vmatprep.subr.mxu0 0.0
      %976 = vmatpush1.msra.mxu0 0.0
      %977 = vmatprep.subr.mxu0 0.0
      %978 = vmatpush1.msra.mxu0 0.0
      %979 = vmatprep.subr.mxu0 0.0
      %980 = vmatpush1.msra.mxu0 0.0
      %981 = vmatprep.subr.mxu0 0.0
      %982 = vmatpush1.msra.mxu0 0.0
      %983 = vmatprep.subr.mxu0 0.0
      %984 = vmatpush1.msra.mxu0 0.0
      %985 = vmatprep.subr.mxu0 0.0
      %986 = vmatpush1.msra.mxu0 0.0
      %987 = vmatprep.subr.mxu0 0.0
      %988 = vmatpush1.msra.mxu0 0.0
      %989 = vmatprep.subr.mxu0 0.0
      %990 = vmatpush1.msra.mxu0 0.0
      %991 = vmatprep.subr.mxu0 0.0
      %992 = vmatpush1.msra.mxu0 0.0
      %993 = vmatprep.subr.mxu0 0.0
      %994 = vmatpush1.msra.mxu0 0.0
      %995 = vmatprep.subr.mxu0 0.0
      %996 = vmatpush1.msra.mxu0 0.0
      %997 = vmatprep.subr.mxu0 0.0
      %998 = vmatpush1.msra.mxu0 0.0
      %999 = vmatprep.subr.mxu0 0.0
      %1000 = vmatpush1.msra.mxu0 0.0
      %1001 = vmatprep.subr.mxu0 0.0
      %1002 = vmatpush1.msra.mxu0 0.0
      %1003 = vmatprep.subr.mxu0 0.0
      %1004 = vmatpush1.msra.mxu0 0.0
      %1005 = vmatprep.subr.mxu0 0.0
      %1006 = vmatpush1.msra.mxu0 0.0
      %1007 = vmatprep.subr.mxu0 0.0
      %1008 = vmatpush1.msra.mxu0 0.0
      %1009 = vmatprep.subr.mxu0 0.0
      %1010 = vmatpush1.msra.mxu0 0.0
      %1011 = vmatprep.subr.mxu0 0.0
      %1012 = vmatpush1.msra.mxu0 0.0
      %1013 = vmatprep.subr.mxu0 0.0
      %1014 = vmatpush1.msra.mxu0 0.0
      %1015 = vmatprep.subr.mxu0 0.0
      %1016 = vmatpush1.msra.mxu0 0.0
      %1017 = vmatprep.subr.mxu0 0.0
      %1018 = vmatpush1.msra.mxu0 0.0
      %1019 = vmatprep.subr.mxu0 0.0
      %1020 = vmatpush1.msra.mxu0 0.0
      %1021 = vmatprep.subr.mxu0 0.0
      %1022 = vmatpush1.msra.mxu0 0.0
      %1023 = vmatprep.subr.mxu0 0.0
      %1024 = vmatpush1.msra.mxu0 0.0
      %1025 = vmatprep.subr.mxu0 0.0
      %1026 = vmatpush1.msra.mxu0 0.0
      %1027 = vmatprep.subr.mxu0 0.0
      %1028 = vmatpush1.msra.mxu0 0.0
      %1029 = vmatprep.subr.mxu0 0.0
      %1030 = vmatpush1.msra.mxu0 0.0
      %1031 = vmatprep.mubr.f32.mxu0 0.0
      %1032 = vmatmul.mubr.f32.gmra.mrb[0].mxu0 %v920
      %v1033 = vpop.f32.mrb[0].mxu0
      %v1034 = vadd.f32 %v917, %v1033
      %v1035 = vpop.f32.mrb[0].mxu0
      %1036 = vmatprep.mubr.f32.mxu0 0.0
      %1037 = vmatmul.mubr.f32.gmra.mrb[0].mxu0 %v923
      %v1038 = vpop.f32.mrb[0].mxu0
      %v1039 = vadd.f32 %v917, %v1038
      %v1040 = vpop.f32.mrb[0].mxu0
      %1041 = vmatprep.mubr.f32.mxu0 0.0
      %1042 = vmatmul.mubr.f32.gmra.mrb[0].mxu0 %v926
      %v1043 = vpop.f32.mrb[0].mxu0
      %v1044 = vadd.f32 %v917, %v1043
      %v1045 = vpop.f32.mrb[0].mxu0
      %1046 = vmatprep.mubr.f32.mxu0 0.0
      %1047 = vmatmul.mubr.f32.gmra.mrb[0].mxu0 %v929
      %v1048 = vpop.f32.mrb[0].mxu0
      %v1049 = vadd.f32 %v917, %v1048
      %v1050 = vpop.f32.mrb[0].mxu0
      %1051 = vmatprep.mubr.f32.mxu0 0.0
      %1052 = vmatmul.mubr.f32.gmra.mrb[0].mxu0 %v932
      %v1053 = vpop.f32.mrb[0].mxu0
      %v1054 = vadd.f32 %v917, %v1053
      %v1055 = vpop.f32.mrb[0].mxu0
      %1056 = vmatprep.mubr.f32.mxu0 0.0
      %1057 = vmatmul.mubr.f32.gmra.mrb[0].mxu0 %v935
      %v1058 = vpop.f32.mrb[0].mxu0
      %v1059 = vadd.f32 %v917, %v1058
      %v1060 = vpop.f32.mrb[0].mxu0
      %1061 = vmatprep.mubr.f32.mxu0 0.0
      %1062 = vmatmul.mubr.f32.gmra.mrb[0].mxu0 %v938
      %v1063 = vpop.f32.mrb[0].mxu0
      %v1064 = vadd.f32 %v917, %v1063
      %v1065 = vpop.f32.mrb[0].mxu0
      %1066 = vmatprep.mubr.f32.mxu0 0.0
      %1067 = vmatmul.mubr.f32.gmra.mrb[0].mxu0 %v941
      %v1068 = vpop.f32.mrb[0].mxu0
      %v1069 = vadd.f32 %v917, %v1068
      %v1070 = vpop.f32.mrb[0].mxu0
      %1071 = vmatprep.mubr.f32.mxu0 0.0
      %1072 = vmatmul.mubr.f32.gmra.mrb[0].mxu0 %v944
      %v1073 = vpop.f32.mrb[0].mxu0
      %v1074 = vadd.f32 %v917, %v1073
      %v1075 = vpop.f32.mrb[0].mxu0
      %1076 = vmatprep.mubr.f32.mxu0 0.0
      %1077 = vmatmul.mubr.f32.gmra.mrb[0].mxu0 %v947
      %v1078 = vpop.f32.mrb[0].mxu0
      %v1079 = vadd.f32 %v917, %v1078
      %v1080 = vpop.f32.mrb[0].mxu0
      %1081 = vmatprep.mubr.f32.mxu0 0.0
      %1082 = vmatmul.mubr.f32.gmra.mrb[0].mxu0 %v950
      %v1083 = vpop.f32.mrb[0].mxu0
      %v1084 = vadd.f32 %v917, %v1083
      %v1085 = vpop.f32.mrb[0].mxu0
      %1086 = vmatprep.mubr.f32.mxu0 0.0
      %1087 = vmatmul.mubr.f32.gmra.mrb[0].mxu0 %v953
      %v1088 = vpop.f32.mrb[0].mxu0
      %v1089 = vadd.f32 %v917, %v1088
      %v1090 = vpop.f32.mrb[0].mxu0
      %1091 = vmatprep.mubr.f32.mxu0 0.0
      %1092 = vmatmul.mubr.f32.gmra.mrb[0].mxu0 %v956
      %v1093 = vpop.f32.mrb[0].mxu0
      %v1094 = vadd.f32 %v917, %v1093
      %v1095 = vpop.f32.mrb[0].mxu0
      %1096 = vmatprep.mubr.f32.mxu0 0.0
      %1097 = vmatmul.mubr.f32.gmra.mrb[0].mxu0 %v959
      %v1098 = vpop.f32.mrb[0].mxu0
      %v1099 = vadd.f32 %v917, %v1098
      %v1100 = vpop.f32.mrb[0].mxu0
      %1101 = vmatprep.mubr.f32.mxu0 0.0
      %1102 = vmatmul.mubr.f32.gmra.mrb[0].mxu0 %v962
      %v1103 = vpop.f32.mrb[0].mxu0
      %v1104 = vadd.f32 %v917, %v1103
      %v1105 = vpop.f32.mrb[0].mxu0
      %1106 = vmatprep.mubr.f32.mxu0 0.0
      %1107 = vmatmul.mubr.f32.gmra.mrb[0].mxu0 %v965
      %v1108 = vpop.f32.mrb[0].mxu0
      %v1109 = vadd.f32 %v917, %v1108
      %v1110 = vpop.f32.mrb[0].mxu0
      %1111 = vdwg.mxu0
      %vm1112 = vcmp.gt.f32.partialorder %v1034, 0.0
      %vm1113 = vcmp.gt.f32.partialorder %v1039, 0.0
      %vm1114 = vcmp.gt.f32.partialorder %v1044, 0.0
      %vm1115 = vcmp.gt.f32.partialorder %v1049, 0.0
      %vm1116 = vcmp.gt.f32.partialorder %v1054, 0.0
      %vm1117 = vcmp.gt.f32.partialorder %v1059, 0.0
      %vm1118 = vcmp.gt.f32.partialorder %v1064, 0.0
      %vm1119 = vcmp.gt.f32.partialorder %v1069, 0.0
      %vm1120 = vcmp.gt.f32.partialorder %v1074, 0.0
      %vm1121 = vcmp.gt.f32.partialorder %v1079, 0.0
      %vm1122 = vcmp.gt.f32.partialorder %v1084, 0.0
      %vm1123 = vcmp.gt.f32.partialorder %v1089, 0.0
      %vm1124 = vcmp.gt.f32.partialorder %v1094, 0.0
      %vm1125 = vcmp.gt.f32.partialorder %v1099, 0.0
      %vm1126 = vcmp.gt.f32.partialorder %v1104, 0.0
      %vm1127 = vcmp.gt.f32.partialorder %v1109, 0.0
      %v1128 = vmul.f32 %v1034, 0.01
      %v1129 = vmul.f32 %v1039, 0.01
      %v1130 = vmul.f32 %v1044, 0.01
      %v1131 = vmul.f32 %v1049, 0.01
      %v1132 = vmul.f32 %v1054, 0.01
      %v1133 = vmul.f32 %v1059, 0.01
      %v1134 = vmul.f32 %v1064, 0.01
      %v1135 = vmul.f32 %v1069, 0.01
      %v1136 = vmul.f32 %v1074, 0.01
      %v1137 = vmul.f32 %v1079, 0.01
      %v1138 = vmul.f32 %v1084, 0.01
      %v1139 = vmul.f32 %v1089, 0.01
      %v1140 = vmul.f32 %v1094, 0.01
      %v1141 = vmul.f32 %v1099, 0.01
      %v1142 = vmul.f32 %v1104, 0.01
      %v1143 = vmul.f32 %v1109, 0.01
      %v1144 = vsel %vm1112, %v1034, %v1128
      %v1145 = vsel %vm1113, %v1039, %v1129
      %v1146 = vsel %vm1114, %v1044, %v1130
      %v1147 = vsel %vm1115, %v1049, %v1131
      %v1148 = vsel %vm1116, %v1054, %v1132
      %v1149 = vsel %vm1117, %v1059, %v1133
      %v1150 = vsel %vm1118, %v1064, %v1134
      %v1151 = vsel %vm1119, %v1069, %v1135
      %v1152 = vsel %vm1120, %v1074, %v1136
      %v1153 = vsel %vm1121, %v1079, %v1137
      %v1154 = vsel %vm1122, %v1084, %v1138
      %v1155 = vsel %vm1123, %v1089, %v1139
      %v1156 = vsel %vm1124, %v1094, %v1140
      %v1157 = vsel %vm1125, %v1099, %v1141
      %v1158 = vsel %vm1126, %v1104, %v1142
      %v1159 = vsel %vm1127, %v1109, %v1143
      %v1160 = vld [vmem:[%s8] sm:$0xff]
      %v1161 = vld [vmem:[%s8 + $0x8] sm:$0xff]
      %v1162 = vld [vmem:[%s8 + $0x10] sm:$0xff]
      %v1163 = vld [vmem:[%s8 + $0x18] sm:$0xff]
      %v1164 = vld [vmem:[%s9] sm:$0x1]
      %v1166 = vlaneseq
      %v1167 = vshrl.u32 %v1166, 7
      %v1168 = vsub.s32 0, %v1167
      %v1169 = vrot.slane %v1164, %v1168
      %v1172 = vsel %vm666, %v1144, 0
      %v1175 = vsel %vm666, %v1145, 0
      %v1178 = vsel %vm666, %v1146, 0
      %v1181 = vsel %vm666, %v1147, 0
      %v1184 = vsel %vm666, %v1148, 0
      %v1187 = vsel %vm666, %v1149, 0
      %v1190 = vsel %vm666, %v1150, 0
      %v1193 = vsel %vm666, %v1151, 0
      %v1196 = vsel %vm666, %v1152, 0
      %v1199 = vsel %vm666, %v1153, 0
      %v1202 = vsel %vm666, %v1154, 0
      %v1205 = vsel %vm666, %v1155, 0
      %v1208 = vsel %vm666, %v1156, 0
      %v1211 = vsel %vm666, %v1157, 0
      %v1214 = vsel %vm666, %v1158, 0
      %v1217 = vsel %vm666, %v1159, 0
      %1219 = vmatprep.subr.mxu0 0.0
      %1220 = vmatpush1.msra.mxu0 %v1160
      %1221 = vmatprep.subr.mxu0 0.0
      %1222 = vmatpush1.msra.mxu0 %v1161
      %1223 = vmatprep.subr.mxu0 0.0
      %1224 = vmatpush1.msra.mxu0 %v1162
      %1225 = vmatprep.subr.mxu0 0.0
      %1226 = vmatpush1.msra.mxu0 %v1163
      %1227 = vmatprep.subr.mxu0 0.0
      %1228 = vmatpush1.msra.mxu0 0.0
      %1229 = vmatprep.subr.mxu0 0.0
      %1230 = vmatpush1.msra.mxu0 0.0
      %1231 = vmatprep.subr.mxu0 0.0
      %1232 = vmatpush1.msra.mxu0 0.0
      %1233 = vmatprep.subr.mxu0 0.0
      %1234 = vmatpush1.msra.mxu0 0.0
      %1235 = vmatprep.subr.mxu0 0.0
      %1236 = vmatpush1.msra.mxu0 0.0
      %1237 = vmatprep.subr.mxu0 0.0
      %1238 = vmatpush1.msra.mxu0 0.0
      %1239 = vmatprep.subr.mxu0 0.0
      %1240 = vmatpush1.msra.mxu0 0.0
      %1241 = vmatprep.subr.mxu0 0.0
      %1242 = vmatpush1.msra.mxu0 0.0
      %1243 = vmatprep.subr.mxu0 0.0
      %1244 = vmatpush1.msra.mxu0 0.0
      %1245 = vmatprep.subr.mxu0 0.0
      %1246 = vmatpush1.msra.mxu0 0.0
      %1247 = vmatprep.subr.mxu0 0.0
      %1248 = vmatpush1.msra.mxu0 0.0
      %1249 = vmatprep.subr.mxu0 0.0
      %1250 = vmatpush1.msra.mxu0 0.0
      %1251 = vmatprep.subr.mxu0 0.0
      %1252 = vmatpush1.msra.mxu0 0.0
      %1253 = vmatprep.subr.mxu0 0.0
      %1254 = vmatpush1.msra.mxu0 0.0
      %1255 = vmatprep.subr.mxu0 0.0
      %1256 = vmatpush1.msra.mxu0 0.0
      %1257 = vmatprep.subr.mxu0 0.0
      %1258 = vmatpush1.msra.mxu0 0.0
      %1259 = vmatprep.subr.mxu0 0.0
      %1260 = vmatpush1.msra.mxu0 0.0
      %1261 = vmatprep.subr.mxu0 0.0
      %1262 = vmatpush1.msra.mxu0 0.0
      %1263 = vmatprep.subr.mxu0 0.0
      %1264 = vmatpush1.msra.mxu0 0.0
      %1265 = vmatprep.subr.mxu0 0.0
      %1266 = vmatpush1.msra.mxu0 0.0
      %1267 = vmatprep.subr.mxu0 0.0
      %1268 = vmatpush1.msra.mxu0 0.0
      %1269 = vmatprep.subr.mxu0 0.0
      %1270 = vmatpush1.msra.mxu0 0.0
      %1271 = vmatprep.subr.mxu0 0.0
      %1272 = vmatpush1.msra.mxu0 0.0
      %1273 = vmatprep.subr.mxu0 0.0
      %1274 = vmatpush1.msra.mxu0 0.0
      %1275 = vmatprep.subr.mxu0 0.0
      %1276 = vmatpush1.msra.mxu0 0.0
      %1277 = vmatprep.subr.mxu0 0.0
      %1278 = vmatpush1.msra.mxu0 0.0
      %1279 = vmatprep.subr.mxu0 0.0
      %1280 = vmatpush1.msra.mxu0 0.0
      %1281 = vmatprep.subr.mxu0 0.0
      %1282 = vmatpush1.msra.mxu0 0.0
      %1283 = vmatprep.mubr.f32.mxu0 0.0
      %1284 = vmatmul.mubr.f32.gmra.mrb[0].mxu0 %v1172
      %v1285 = vpop.f32.mrb[0].mxu0
      %v1286 = vadd.f32 %v1169, %v1285
      %v1287 = vpop.f32.mrb[0].mxu0
      %1288 = vmatprep.mubr.f32.mxu0 0.0
      %1289 = vmatmul.mubr.f32.gmra.mrb[0].mxu0 %v1175
      %v1290 = vpop.f32.mrb[0].mxu0
      %v1291 = vadd.f32 %v1169, %v1290
      %v1292 = vpop.f32.mrb[0].mxu0
      %1293 = vmatprep.mubr.f32.mxu0 0.0
      %1294 = vmatmul.mubr.f32.gmra.mrb[0].mxu0 %v1178
      %v1295 = vpop.f32.mrb[0].mxu0
      %v1296 = vadd.f32 %v1169, %v1295
      %v1297 = vpop.f32.mrb[0].mxu0
      %1298 = vmatprep.mubr.f32.mxu0 0.0
      %1299 = vmatmul.mubr.f32.gmra.mrb[0].mxu0 %v1181
      %v1300 = vpop.f32.mrb[0].mxu0
      %v1301 = vadd.f32 %v1169, %v1300
      %v1302 = vpop.f32.mrb[0].mxu0
      %1303 = vmatprep.mubr.f32.mxu0 0.0
      %1304 = vmatmul.mubr.f32.gmra.mrb[0].mxu0 %v1184
      %v1305 = vpop.f32.mrb[0].mxu0
      %v1306 = vadd.f32 %v1169, %v1305
      %v1307 = vpop.f32.mrb[0].mxu0
      %1308 = vmatprep.mubr.f32.mxu0 0.0
      %1309 = vmatmul.mubr.f32.gmra.mrb[0].mxu0 %v1187
      %v1310 = vpop.f32.mrb[0].mxu0
      %v1311 = vadd.f32 %v1169, %v1310
      %v1312 = vpop.f32.mrb[0].mxu0
      %1313 = vmatprep.mubr.f32.mxu0 0.0
      %1314 = vmatmul.mubr.f32.gmra.mrb[0].mxu0 %v1190
      %v1315 = vpop.f32.mrb[0].mxu0
      %v1316 = vadd.f32 %v1169, %v1315
      %v1317 = vpop.f32.mrb[0].mxu0
      %1318 = vmatprep.mubr.f32.mxu0 0.0
      %1319 = vmatmul.mubr.f32.gmra.mrb[0].mxu0 %v1193
      %v1320 = vpop.f32.mrb[0].mxu0
      %v1321 = vadd.f32 %v1169, %v1320
      %v1322 = vpop.f32.mrb[0].mxu0
      %1323 = vmatprep.mubr.f32.mxu0 0.0
      %1324 = vmatmul.mubr.f32.gmra.mrb[0].mxu0 %v1196
      %v1325 = vpop.f32.mrb[0].mxu0
      %v1326 = vadd.f32 %v1169, %v1325
      %v1327 = vpop.f32.mrb[0].mxu0
      %1328 = vmatprep.mubr.f32.mxu0 0.0
      %1329 = vmatmul.mubr.f32.gmra.mrb[0].mxu0 %v1199
      %v1330 = vpop.f32.mrb[0].mxu0
      %v1331 = vadd.f32 %v1169, %v1330
      %v1332 = vpop.f32.mrb[0].mxu0
      %1333 = vmatprep.mubr.f32.mxu0 0.0
      %1334 = vmatmul.mubr.f32.gmra.mrb[0].mxu0 %v1202
      %v1335 = vpop.f32.mrb[0].mxu0
      %v1336 = vadd.f32 %v1169, %v1335
      %v1337 = vpop.f32.mrb[0].mxu0
      %1338 = vmatprep.mubr.f32.mxu0 0.0
      %1339 = vmatmul.mubr.f32.gmra.mrb[0].mxu0 %v1205
      %v1340 = vpop.f32.mrb[0].mxu0
      %v1341 = vadd.f32 %v1169, %v1340
      %v1342 = vpop.f32.mrb[0].mxu0
      %1343 = vmatprep.mubr.f32.mxu0 0.0
      %1344 = vmatmul.mubr.f32.gmra.mrb[0].mxu0 %v1208
      %v1345 = vpop.f32.mrb[0].mxu0
      %v1346 = vadd.f32 %v1169, %v1345
      %v1347 = vpop.f32.mrb[0].mxu0
      %1348 = vmatprep.mubr.f32.mxu0 0.0
      %1349 = vmatmul.mubr.f32.gmra.mrb[0].mxu0 %v1211
      %v1350 = vpop.f32.mrb[0].mxu0
      %v1351 = vadd.f32 %v1169, %v1350
      %v1352 = vpop.f32.mrb[0].mxu0
      %1353 = vmatprep.mubr.f32.mxu0 0.0
      %1354 = vmatmul.mubr.f32.gmra.mrb[0].mxu0 %v1214
      %v1355 = vpop.f32.mrb[0].mxu0
      %v1356 = vadd.f32 %v1169, %v1355
      %v1357 = vpop.f32.mrb[0].mxu0
      %1358 = vmatprep.mubr.f32.mxu0 0.0
      %1359 = vmatmul.mubr.f32.gmra.mrb[0].mxu0 %v1217
      %v1360 = vpop.f32.mrb[0].mxu0
      %v1361 = vadd.f32 %v1169, %v1360
      %v1362 = vpop.f32.mrb[0].mxu0
      %1363 = vdwg.mxu0
      %v1364 = vmax.f32 %v1286, -20.0
      %v1365 = vmax.f32 %v1291, -20.0
      %v1366 = vmax.f32 %v1296, -20.0
      %v1367 = vmax.f32 %v1301, -20.0
      %v1368 = vmax.f32 %v1306, -20.0
      %v1369 = vmax.f32 %v1311, -20.0
      %v1370 = vmax.f32 %v1316, -20.0
      %v1371 = vmax.f32 %v1321, -20.0
      %v1372 = vmax.f32 %v1326, -20.0
      %v1373 = vmax.f32 %v1331, -20.0
      %v1374 = vmax.f32 %v1336, -20.0
      %v1375 = vmax.f32 %v1341, -20.0
      %v1376 = vmax.f32 %v1346, -20.0
      %v1377 = vmax.f32 %v1351, -20.0
      %v1378 = vmax.f32 %v1356, -20.0
      %v1379 = vmax.f32 %v1361, -20.0
      %v1380 = vmin.f32 %v1364, 2.0
      %v1381 = vmin.f32 %v1365, 2.0
      %v1382 = vmin.f32 %v1366, 2.0
      %v1383 = vmin.f32 %v1367, 2.0
      %v1384 = vmin.f32 %v1368, 2.0
      %v1385 = vmin.f32 %v1369, 2.0
      %v1386 = vmin.f32 %v1370, 2.0
      %v1387 = vmin.f32 %v1371, 2.0
      %v1388 = vmin.f32 %v1372, 2.0
      %v1389 = vmin.f32 %v1373, 2.0
      %v1390 = vmin.f32 %v1374, 2.0
      %v1391 = vmin.f32 %v1375, 2.0
      %v1392 = vmin.f32 %v1376, 2.0
      %v1393 = vmin.f32 %v1377, 2.0
      %v1394 = vmin.f32 %v1378, 2.0
      %v1395 = vmin.f32 %v1379, 2.0
      %v1396 = vmul.f32 %v1380, 1.442695
      %v1397 = vpow.pop %v1396
      %v1398 = vmul.f32 %v1381, 1.442695
      %v1399 = vpow.pop %v1398
      %v1400 = vmul.f32 %v1382, 1.442695
      %v1401 = vpow.pop %v1400
      %v1402 = vmul.f32 %v1383, 1.442695
      %v1403 = vpow.pop %v1402
      %v1404 = vmul.f32 %v1384, 1.442695
      %v1405 = vpow.pop %v1404
      %v1406 = vmul.f32 %v1385, 1.442695
      %v1407 = vpow.pop %v1406
      %v1408 = vmul.f32 %v1386, 1.442695
      %v1409 = vpow.pop %v1408
      %v1410 = vmul.f32 %v1387, 1.442695
      %v1411 = vpow.pop %v1410
      %v1412 = vmul.f32 %v1388, 1.442695
      %v1413 = vpow.pop %v1412
      %v1414 = vmul.f32 %v1389, 1.442695
      %v1415 = vpow.pop %v1414
      %v1416 = vmul.f32 %v1390, 1.442695
      %v1417 = vpow.pop %v1416
      %v1418 = vmul.f32 %v1391, 1.442695
      %v1419 = vpow.pop %v1418
      %v1420 = vmul.f32 %v1392, 1.442695
      %v1421 = vpow.pop %v1420
      %v1422 = vmul.f32 %v1393, 1.442695
      %v1423 = vpow.pop %v1422
      %v1424 = vmul.f32 %v1394, 1.442695
      %v1425 = vpow.pop %v1424
      %v1426 = vmul.f32 %v1395, 1.442695
      %v1427 = vpow.pop %v1426
      %v1428 = vld [vmem:[%s377] sm:$0xff]
      %v1429 = vld [vmem:[%s377 + $0x8] sm:$0xff]
      %v1430 = vld [vmem:[%s377 + $0x10] sm:$0xff]
      %v1431 = vld [vmem:[%s377 + $0x18] sm:$0xff]
      %v1432 = vld [vmem:[%s377 + $0x20] sm:$0xff]
      %v1433 = vld [vmem:[%s377 + $0x28] sm:$0xff]
      %v1434 = vld [vmem:[%s377 + $0x30] sm:$0xff]
      %v1435 = vld [vmem:[%s377 + $0x38] sm:$0xff]
      %v1436 = vld [vmem:[%s377 + $0x40] sm:$0xff]
      %v1437 = vld [vmem:[%s377 + $0x48] sm:$0xff]
      %v1438 = vld [vmem:[%s377 + $0x50] sm:$0xff]
      %v1439 = vld [vmem:[%s377 + $0x58] sm:$0xff]
      %v1440 = vld [vmem:[%s377 + $0x60] sm:$0xff]
      %v1441 = vld [vmem:[%s377 + $0x68] sm:$0xff]
      %v1442 = vld [vmem:[%s377 + $0x70] sm:$0xff]
      %v1443 = vld [vmem:[%s377 + $0x78] sm:$0xff]
      %1460 = vrot.lane.b32.xlu0 %v1428, 1
      %v1461 = vpop.permute.xlu0 %1460
      %1462 = vrot.lane.b32.xlu0 %v1429, 1
      %v1463 = vpop.permute.xlu0 %1462
      %1464 = vrot.lane.b32.xlu0 %v1430, 1
      %v1465 = vpop.permute.xlu0 %1464
      %1466 = vrot.lane.b32.xlu0 %v1431, 1
      %v1467 = vpop.permute.xlu0 %1466
      %1468 = vrot.lane.b32.xlu0 %v1432, 1
      %v1469 = vpop.permute.xlu0 %1468
      %1470 = vrot.lane.b32.xlu0 %v1433, 1
      %v1471 = vpop.permute.xlu0 %1470
      %1472 = vrot.lane.b32.xlu0 %v1434, 1
      %v1473 = vpop.permute.xlu0 %1472
      %1474 = vrot.lane.b32.xlu0 %v1435, 1
      %v1475 = vpop.permute.xlu0 %1474
      %1476 = vrot.lane.b32.xlu0 %v1436, 1
      %v1477 = vpop.permute.xlu0 %1476
      %1478 = vrot.lane.b32.xlu0 %v1437, 1
      %v1479 = vpop.permute.xlu0 %1478
      %1480 = vrot.lane.b32.xlu0 %v1438, 1
      %v1481 = vpop.permute.xlu0 %1480
      %1482 = vrot.lane.b32.xlu0 %v1439, 1
      %v1483 = vpop.permute.xlu0 %1482
      %1484 = vrot.lane.b32.xlu0 %v1440, 1
      %v1485 = vpop.permute.xlu0 %1484
      %1486 = vrot.lane.b32.xlu0 %v1441, 1
      %v1487 = vpop.permute.xlu0 %1486
      %1488 = vrot.lane.b32.xlu0 %v1442, 1
      %v1489 = vpop.permute.xlu0 %1488
      %1490 = vrot.lane.b32.xlu0 %v1443, 1
      %v1491 = vpop.permute.xlu0 %1490
      %v1508 = vmul.f32 %v1397, %v1461
      %v1509 = vmul.f32 %v1399, %v1463
      %v1510 = vmul.f32 %v1401, %v1465
      %v1511 = vmul.f32 %v1403, %v1467
      %v1512 = vmul.f32 %v1405, %v1469
      %v1513 = vmul.f32 %v1407, %v1471
      %v1514 = vmul.f32 %v1409, %v1473
      %v1515 = vmul.f32 %v1411, %v1475
      %v1516 = vmul.f32 %v1413, %v1477
      %v1517 = vmul.f32 %v1415, %v1479
      %v1518 = vmul.f32 %v1417, %v1481
      %v1519 = vmul.f32 %v1419, %v1483
      %v1520 = vmul.f32 %v1421, %v1485
      %v1521 = vmul.f32 %v1423, %v1487
      %v1522 = vmul.f32 %v1425, %v1489
      %v1523 = vmul.f32 %v1427, %v1491
      %1540 = vrot.lane.b32.xlu0 %v1508, 127
      %v1541 = vpop.permute.xlu0 %1540
      %1542 = vrot.lane.b32.xlu0 %v1509, 127
      %v1543 = vpop.permute.xlu0 %1542
      %1544 = vrot.lane.b32.xlu0 %v1510, 127
      %v1545 = vpop.permute.xlu0 %1544
      %1546 = vrot.lane.b32.xlu0 %v1511, 127
      %v1547 = vpop.permute.xlu0 %1546
      %1548 = vrot.lane.b32.xlu0 %v1512, 127
      %v1549 = vpop.permute.xlu0 %1548
      %1550 = vrot.lane.b32.xlu0 %v1513, 127
      %v1551 = vpop.permute.xlu0 %1550
      %1552 = vrot.lane.b32.xlu0 %v1514, 127
      %v1553 = vpop.permute.xlu0 %1552
      %1554 = vrot.lane.b32.xlu0 %v1515, 127
      %v1555 = vpop.permute.xlu0 %1554
      %1556 = vrot.lane.b32.xlu0 %v1516, 127
      %v1557 = vpop.permute.xlu0 %1556
      %1558 = vrot.lane.b32.xlu0 %v1517, 127
      %v1559 = vpop.permute.xlu0 %1558
      %1560 = vrot.lane.b32.xlu0 %v1518, 127
      %v1561 = vpop.permute.xlu0 %1560
      %1562 = vrot.lane.b32.xlu0 %v1519, 127
      %v1563 = vpop.permute.xlu0 %1562
      %1564 = vrot.lane.b32.xlu0 %v1520, 127
      %v1565 = vpop.permute.xlu0 %1564
      %1566 = vrot.lane.b32.xlu0 %v1521, 127
      %v1567 = vpop.permute.xlu0 %1566
      %1568 = vrot.lane.b32.xlu0 %v1522, 127
      %v1569 = vpop.permute.xlu0 %1568
      %1570 = vrot.lane.b32.xlu0 %v1523, 127
      %v1571 = vpop.permute.xlu0 %1570
      %v1588 = vadd.f32 %v1286, %v1541
      %v1589 = vadd.f32 %v1291, %v1543
      %v1590 = vadd.f32 %v1296, %v1545
      %v1591 = vadd.f32 %v1301, %v1547
      %v1592 = vadd.f32 %v1306, %v1549
      %v1593 = vadd.f32 %v1311, %v1551
      %v1594 = vadd.f32 %v1316, %v1553
      %v1595 = vadd.f32 %v1321, %v1555
      %v1596 = vadd.f32 %v1326, %v1557
      %v1597 = vadd.f32 %v1331, %v1559
      %v1598 = vadd.f32 %v1336, %v1561
      %v1599 = vadd.f32 %v1341, %v1563
      %v1600 = vadd.f32 %v1346, %v1565
      %v1601 = vadd.f32 %v1351, %v1567
      %v1602 = vadd.f32 %v1356, %v1569
      %v1603 = vadd.f32 %v1361, %v1571
      %v1604 = vtanh.pop %v1588
      %v1605 = vtanh.pop %v1589
      %v1606 = vtanh.pop %v1590
      %v1607 = vtanh.pop %v1591
      %v1608 = vtanh.pop %v1592
      %v1609 = vtanh.pop %v1593
      %v1610 = vtanh.pop %v1594
      %v1611 = vtanh.pop %v1595
      %v1612 = vtanh.pop %v1596
      %v1613 = vtanh.pop %v1597
      %v1614 = vtanh.pop %v1598
      %v1615 = vtanh.pop %v1599
      %v1616 = vtanh.pop %v1600
      %v1617 = vtanh.pop %v1601
      %v1618 = vtanh.pop %v1602
      %v1619 = vtanh.pop %v1603
      %v1620 = vmul.f32 %v1428, -0.5
      %v1621 = vmul.f32 %v1429, -0.5
      %v1622 = vmul.f32 %v1430, -0.5
      %v1623 = vmul.f32 %v1431, -0.5
      %v1624 = vmul.f32 %v1432, -0.5
      %v1625 = vmul.f32 %v1433, -0.5
      %v1626 = vmul.f32 %v1434, -0.5
      %v1627 = vmul.f32 %v1435, -0.5
      %v1628 = vmul.f32 %v1436, -0.5
      %v1629 = vmul.f32 %v1437, -0.5
      %v1630 = vmul.f32 %v1438, -0.5
      %v1631 = vmul.f32 %v1439, -0.5
      %v1632 = vmul.f32 %v1440, -0.5
      %v1633 = vmul.f32 %v1441, -0.5
      %v1634 = vmul.f32 %v1442, -0.5
      %v1635 = vmul.f32 %v1443, -0.5
      %v1636 = vmul.f32 %v1620, %v1428
      %v1637 = vmul.f32 %v1621, %v1429
      %v1638 = vmul.f32 %v1622, %v1430
      %v1639 = vmul.f32 %v1623, %v1431
      %v1640 = vmul.f32 %v1624, %v1432
      %v1641 = vmul.f32 %v1625, %v1433
      %v1642 = vmul.f32 %v1626, %v1434
      %v1643 = vmul.f32 %v1627, %v1435
      %v1644 = vmul.f32 %v1628, %v1436
      %v1645 = vmul.f32 %v1629, %v1437
      %v1646 = vmul.f32 %v1630, %v1438
      %v1647 = vmul.f32 %v1631, %v1439
      %v1648 = vmul.f32 %v1632, %v1440
      %v1649 = vmul.f32 %v1633, %v1441
      %v1650 = vmul.f32 %v1634, %v1442
      %v1651 = vmul.f32 %v1635, %v1443
      %1668 = vrot.lane.b32.xlu0 %v1380, 127
      %v1669 = vpop.permute.xlu0 %1668
      %1670 = vrot.lane.b32.xlu0 %v1381, 127
      %v1671 = vpop.permute.xlu0 %1670
      %1672 = vrot.lane.b32.xlu0 %v1382, 127
      %v1673 = vpop.permute.xlu0 %1672
      %1674 = vrot.lane.b32.xlu0 %v1383, 127
      %v1675 = vpop.permute.xlu0 %1674
      %1676 = vrot.lane.b32.xlu0 %v1384, 127
      %v1677 = vpop.permute.xlu0 %1676
      %1678 = vrot.lane.b32.xlu0 %v1385, 127
      %v1679 = vpop.permute.xlu0 %1678
      %1680 = vrot.lane.b32.xlu0 %v1386, 127
      %v1681 = vpop.permute.xlu0 %1680
      %1682 = vrot.lane.b32.xlu0 %v1387, 127
      %v1683 = vpop.permute.xlu0 %1682
      %1684 = vrot.lane.b32.xlu0 %v1388, 127
      %v1685 = vpop.permute.xlu0 %1684
      %1686 = vrot.lane.b32.xlu0 %v1389, 127
      %v1687 = vpop.permute.xlu0 %1686
      %1688 = vrot.lane.b32.xlu0 %v1390, 127
      %v1689 = vpop.permute.xlu0 %1688
      %1690 = vrot.lane.b32.xlu0 %v1391, 127
      %v1691 = vpop.permute.xlu0 %1690
      %1692 = vrot.lane.b32.xlu0 %v1392, 127
      %v1693 = vpop.permute.xlu0 %1692
      %1694 = vrot.lane.b32.xlu0 %v1393, 127
      %v1695 = vpop.permute.xlu0 %1694
      %1696 = vrot.lane.b32.xlu0 %v1394, 127
      %v1697 = vpop.permute.xlu0 %1696
      %1698 = vrot.lane.b32.xlu0 %v1395, 127
      %v1699 = vpop.permute.xlu0 %1698
      %v1716 = vsub.f32 %v1636, %v1669
      %v1717 = vsub.f32 %v1637, %v1671
      %v1718 = vsub.f32 %v1638, %v1673
      %v1719 = vsub.f32 %v1639, %v1675
      %v1720 = vsub.f32 %v1640, %v1677
      %v1721 = vsub.f32 %v1641, %v1679
      %v1722 = vsub.f32 %v1642, %v1681
      %v1723 = vsub.f32 %v1643, %v1683
      %v1724 = vsub.f32 %v1644, %v1685
      %v1725 = vsub.f32 %v1645, %v1687
      %v1726 = vsub.f32 %v1646, %v1689
      %v1727 = vsub.f32 %v1647, %v1691
      %v1728 = vsub.f32 %v1648, %v1693
      %v1729 = vsub.f32 %v1649, %v1695
      %v1730 = vsub.f32 %v1650, %v1697
      %v1731 = vsub.f32 %v1651, %v1699
      %v1732 = vsub.f32 %v1716, 0.9189385
      %v1733 = vsub.f32 %v1717, 0.9189385
      %v1734 = vsub.f32 %v1718, 0.9189385
      %v1735 = vsub.f32 %v1719, 0.9189385
      %v1736 = vsub.f32 %v1720, 0.9189385
      %v1737 = vsub.f32 %v1721, 0.9189385
      %v1738 = vsub.f32 %v1722, 0.9189385
      %v1739 = vsub.f32 %v1723, 0.9189385
      %v1740 = vsub.f32 %v1724, 0.9189385
      %v1741 = vsub.f32 %v1725, 0.9189385
      %v1742 = vsub.f32 %v1726, 0.9189385
      %v1743 = vsub.f32 %v1727, 0.9189385
      %v1744 = vsub.f32 %v1728, 0.9189385
      %v1745 = vsub.f32 %v1729, 0.9189385
      %v1746 = vsub.f32 %v1730, 0.9189385
      %v1747 = vsub.f32 %v1731, 0.9189385
      %v1748 = vmul.f32 %v1604, %v1604
      %v1749 = vmul.f32 %v1605, %v1605
      %v1750 = vmul.f32 %v1606, %v1606
      %v1751 = vmul.f32 %v1607, %v1607
      %v1752 = vmul.f32 %v1608, %v1608
      %v1753 = vmul.f32 %v1609, %v1609
      %v1754 = vmul.f32 %v1610, %v1610
      %v1755 = vmul.f32 %v1611, %v1611
      %v1756 = vmul.f32 %v1612, %v1612
      %v1757 = vmul.f32 %v1613, %v1613
      %v1758 = vmul.f32 %v1614, %v1614
      %v1759 = vmul.f32 %v1615, %v1615
      %v1760 = vmul.f32 %v1616, %v1616
      %v1761 = vmul.f32 %v1617, %v1617
      %v1762 = vmul.f32 %v1618, %v1618
      %v1763 = vmul.f32 %v1619, %v1619
      %v1764 = vsub.f32 1.0, %v1748
      %v1765 = vsub.f32 1.0, %v1749
      %v1766 = vsub.f32 1.0, %v1750
      %v1767 = vsub.f32 1.0, %v1751
      %v1768 = vsub.f32 1.0, %v1752
      %v1769 = vsub.f32 1.0, %v1753
      %v1770 = vsub.f32 1.0, %v1754
      %v1771 = vsub.f32 1.0, %v1755
      %v1772 = vsub.f32 1.0, %v1756
      %v1773 = vsub.f32 1.0, %v1757
      %v1774 = vsub.f32 1.0, %v1758
      %v1775 = vsub.f32 1.0, %v1759
      %v1776 = vsub.f32 1.0, %v1760
      %v1777 = vsub.f32 1.0, %v1761
      %v1778 = vsub.f32 1.0, %v1762
      %v1779 = vsub.f32 1.0, %v1763
      %v1780 = vadd.f32 %v1764, 1e-06
      %v1781 = vadd.f32 %v1765, 1e-06
      %v1782 = vadd.f32 %v1766, 1e-06
      %v1783 = vadd.f32 %v1767, 1e-06
      %v1784 = vadd.f32 %v1768, 1e-06
      %v1785 = vadd.f32 %v1769, 1e-06
      %v1786 = vadd.f32 %v1770, 1e-06
      %v1787 = vadd.f32 %v1771, 1e-06
      %v1788 = vadd.f32 %v1772, 1e-06
      %v1789 = vadd.f32 %v1773, 1e-06
      %v1790 = vadd.f32 %v1774, 1e-06
      %v1791 = vadd.f32 %v1775, 1e-06
      %v1792 = vadd.f32 %v1776, 1e-06
      %v1793 = vadd.f32 %v1777, 1e-06
      %v1794 = vadd.f32 %v1778, 1e-06
      %v1795 = vadd.f32 %v1779, 1e-06
      %v1796 = vlog2.pop %v1780
      %v1797 = vmul.f32 %v1796, 0.6931472
      %v1798 = vlog2.pop %v1781
      %v1799 = vmul.f32 %v1798, 0.6931472
      %v1800 = vlog2.pop %v1782
      %v1801 = vmul.f32 %v1800, 0.6931472
      %v1802 = vlog2.pop %v1783
      %v1803 = vmul.f32 %v1802, 0.6931472
      %v1804 = vlog2.pop %v1784
      %v1805 = vmul.f32 %v1804, 0.6931472
      %v1806 = vlog2.pop %v1785
      %v1807 = vmul.f32 %v1806, 0.6931472
      %v1808 = vlog2.pop %v1786
      %v1809 = vmul.f32 %v1808, 0.6931472
      %v1810 = vlog2.pop %v1787
      %v1811 = vmul.f32 %v1810, 0.6931472
      %v1812 = vlog2.pop %v1788
      %v1813 = vmul.f32 %v1812, 0.6931472
      %v1814 = vlog2.pop %v1789
      %v1815 = vmul.f32 %v1814, 0.6931472
      %v1816 = vlog2.pop %v1790
      %v1817 = vmul.f32 %v1816, 0.6931472
      %v1818 = vlog2.pop %v1791
      %v1819 = vmul.f32 %v1818, 0.6931472
      %v1820 = vlog2.pop %v1792
      %v1821 = vmul.f32 %v1820, 0.6931472
      %v1822 = vlog2.pop %v1793
      %v1823 = vmul.f32 %v1822, 0.6931472
      %v1824 = vlog2.pop %v1794
      %v1825 = vmul.f32 %v1824, 0.6931472
      %v1826 = vlog2.pop %v1795
      %v1827 = vmul.f32 %v1826, 0.6931472
      %v1828 = vadd.f32 %v1797, 0.0
      %v1829 = vadd.f32 %v1799, 0.0
      %v1830 = vadd.f32 %v1801, 0.0
      %v1831 = vadd.f32 %v1803, 0.0
      %v1832 = vadd.f32 %v1805, 0.0
      %v1833 = vadd.f32 %v1807, 0.0
      %v1834 = vadd.f32 %v1809, 0.0
      %v1835 = vadd.f32 %v1811, 0.0
      %v1836 = vadd.f32 %v1813, 0.0
      %v1837 = vadd.f32 %v1815, 0.0
      %v1838 = vadd.f32 %v1817, 0.0
      %v1839 = vadd.f32 %v1819, 0.0
      %v1840 = vadd.f32 %v1821, 0.0
      %v1841 = vadd.f32 %v1823, 0.0
      %v1842 = vadd.f32 %v1825, 0.0
      %v1843 = vadd.f32 %v1827, 0.0
      %v1844 = vsub.f32 %v1732, %v1828
      %v1845 = vsub.f32 %v1733, %v1829
      %v1846 = vsub.f32 %v1734, %v1830
      %v1847 = vsub.f32 %v1735, %v1831
      %v1848 = vsub.f32 %v1736, %v1832
      %v1849 = vsub.f32 %v1737, %v1833
      %v1850 = vsub.f32 %v1738, %v1834
      %v1851 = vsub.f32 %v1739, %v1835
      %v1852 = vsub.f32 %v1740, %v1836
      %v1853 = vsub.f32 %v1741, %v1837
      %v1854 = vsub.f32 %v1742, %v1838
      %v1855 = vsub.f32 %v1743, %v1839
      %v1856 = vsub.f32 %v1744, %v1840
      %v1857 = vsub.f32 %v1745, %v1841
      %v1858 = vsub.f32 %v1746, %v1842
      %v1859 = vsub.f32 %v1747, %v1843
      %1876 = vrot.lane.b32.xlu0 %v1844, 1
      %v1877 = vpop.permute.xlu0 %1876
      %1878 = vrot.lane.b32.xlu0 %v1845, 1
      %v1879 = vpop.permute.xlu0 %1878
      %1880 = vrot.lane.b32.xlu0 %v1846, 1
      %v1881 = vpop.permute.xlu0 %1880
      %1882 = vrot.lane.b32.xlu0 %v1847, 1
      %v1883 = vpop.permute.xlu0 %1882
      %1884 = vrot.lane.b32.xlu0 %v1848, 1
      %v1885 = vpop.permute.xlu0 %1884
      %1886 = vrot.lane.b32.xlu0 %v1849, 1
      %v1887 = vpop.permute.xlu0 %1886
      %1888 = vrot.lane.b32.xlu0 %v1850, 1
      %v1889 = vpop.permute.xlu0 %1888
      %1890 = vrot.lane.b32.xlu0 %v1851, 1
      %v1891 = vpop.permute.xlu0 %1890
      %1892 = vrot.lane.b32.xlu0 %v1852, 1
      %v1893 = vpop.permute.xlu0 %1892
      %1894 = vrot.lane.b32.xlu0 %v1853, 1
      %v1895 = vpop.permute.xlu0 %1894
      %1896 = vrot.lane.b32.xlu0 %v1854, 1
      %v1897 = vpop.permute.xlu0 %1896
      %1898 = vrot.lane.b32.xlu0 %v1855, 1
      %v1899 = vpop.permute.xlu0 %1898
      %1900 = vrot.lane.b32.xlu0 %v1856, 1
      %v1901 = vpop.permute.xlu0 %1900
      %1902 = vrot.lane.b32.xlu0 %v1857, 1
      %v1903 = vpop.permute.xlu0 %1902
      %1904 = vrot.lane.b32.xlu0 %v1858, 1
      %v1905 = vpop.permute.xlu0 %1904
      %1906 = vrot.lane.b32.xlu0 %v1859, 1
      %v1907 = vpop.permute.xlu0 %1906
      %vm1924 = vcmask 7168
      %v1925 = vsel %vm1924, %v1604, %v1877
      %v1926 = vsel %vm1924, %v1605, %v1879
      %v1927 = vsel %vm1924, %v1606, %v1881
      %v1928 = vsel %vm1924, %v1607, %v1883
      %v1929 = vsel %vm1924, %v1608, %v1885
      %v1930 = vsel %vm1924, %v1609, %v1887
      %v1931 = vsel %vm1924, %v1610, %v1889
      %v1932 = vsel %vm1924, %v1611, %v1891
      %v1933 = vsel %vm1924, %v1612, %v1893
      %v1934 = vsel %vm1924, %v1613, %v1895
      %v1935 = vsel %vm1924, %v1614, %v1897
      %v1936 = vsel %vm1924, %v1615, %v1899
      %v1937 = vsel %vm1924, %v1616, %v1901
      %v1938 = vsel %vm1924, %v1617, %v1903
      %v1939 = vsel %vm1924, %v1618, %v1905
      %v1940 = vsel %vm1924, %v1619, %v1907
      %vm1941 = vcmask 15360
      %1942 = vst.msk [vmem:[%s383] sm:$0xff] %vm1941, %v1925
      %1943 = vst.msk [vmem:[%s383 + $0x8] sm:$0xff] %vm1941, %v1926
      %1944 = vst.msk [vmem:[%s383 + $0x10] sm:$0xff] %vm1941, %v1927
      %1945 = vst.msk [vmem:[%s383 + $0x18] sm:$0xff] %vm1941, %v1928
      %1946 = vst.msk [vmem:[%s383 + $0x20] sm:$0xff] %vm1941, %v1929
      %1947 = vst.msk [vmem:[%s383 + $0x28] sm:$0xff] %vm1941, %v1930
      %1948 = vst.msk [vmem:[%s383 + $0x30] sm:$0xff] %vm1941, %v1931
      %1949 = vst.msk [vmem:[%s383 + $0x38] sm:$0xff] %vm1941, %v1932
      %1950 = vst.msk [vmem:[%s383 + $0x40] sm:$0xff] %vm1941, %v1933
      %1951 = vst.msk [vmem:[%s383 + $0x48] sm:$0xff] %vm1941, %v1934
      %1952 = vst.msk [vmem:[%s383 + $0x50] sm:$0xff] %vm1941, %v1935
      %1953 = vst.msk [vmem:[%s383 + $0x58] sm:$0xff] %vm1941, %v1936
      %1954 = vst.msk [vmem:[%s383 + $0x60] sm:$0xff] %vm1941, %v1937
      %1955 = vst.msk [vmem:[%s383 + $0x68] sm:$0xff] %vm1941, %v1938
      %1956 = vst.msk [vmem:[%s383 + $0x70] sm:$0xff] %vm1941, %v1939
      %1957 = vst.msk [vmem:[%s383 + $0x78] sm:$0xff] %vm1941, %v1940
      %s1958 = smul.u32 16, %s21
      %p1959 = scmp.lt.s32.totalorder %s1958, 31
      %s1960 = scalar_select %p1959, %s1958, 31
      %s1961 = smul.addr %s1960, 8
      %s1962 = scalar_lea.vmem %s10, %s1961
      // Predicated region
      $region61: #{tpu_custom_call.1} parent=59 // pred_check
        %p1963 = pneg %p259
      $region62: #{tpu_custom_call.1} parent=59 // pred_check_branch
        %1965 = sbr.rel (%p1963) target = $region64
      $region63: #{tpu_custom_call.1} parent=59 // pred_region
        %s1966 = smul.u32 16, %s21
      $region64: #{tpu_custom_call.1} parent=59 // pred_fallthru
        _
    $region60: #{tpu_custom_call.1} parent=5 // pred_fallthru
      _
    %p1967 = scmp.le.s32.totalorder 2, %s16
    // Predicated region
    $region65: #{tpu_custom_call.1} parent=5 // pred_check
      %p1968 = pneg %p1967
    $region66: #{tpu_custom_call.1} parent=5 // pred_check_branch
      %1970 = sbr.rel (%p1968) target = $region68
    $region67: #{tpu_custom_call.1} parent=5 // pred_region
      %s1971 = ssub.s32 %s16, 2
      // Predicated region
      $region69: #{tpu_custom_call.1} parent=67 // pred_check
        %p1972 = pneg %p265
      $region70: #{tpu_custom_call.1} parent=67 // pred_check_branch
        %1974 = sbr.rel (%p1972) target = $region72
      $region71: #{tpu_custom_call.1} parent=67 // pred_region
        %s1975 = smul.u32 16, %s22
        %p1976 = scmp.lt.s32.totalorder %s1975, 31
        %s1977 = scalar_select %p1976, %s1975, 31
        %s1978 = smul.addr %s1977, 8
        %s1979 = scalar_lea.vmem %s10, %s1978
      $region72: #{tpu_custom_call.1} parent=67 // pred_fallthru
        _
    $region68: #{tpu_custom_call.1} parent=5 // pred_fallthru
      _
  $region6: #{tpu_custom_call.1} parent=0 // loop_footer
    %s20 = sadd.s32 1, %s16
  $region7: #{tpu_custom_call.1} parent=0 // loop_footer_branch
    %15 = sbr.rel target = $region3
  $region8: #{tpu_custom_call.1} parent=0 // loop_exit
    _

</llo_original>
